<compile_context>
chip_gen: v7x
topology: tpu7x:2x2x1
jax: 0.10.0
libtpu: 0.0.40
codegen_flags: <defaults>
</compile_context>

<pallas_src>
import functools

import jax
import jax.numpy as jnp
from jax.experimental import pallas as pl
from jax.experimental.pallas import tpu as pltpu

BN_EPS = 1e-5
NEG_SLOPE = 0.1
LANE = 128


def _round_up(v, m):
    return (v + m - 1) // m * m


def _gin_fused_kernel(adj_ref, x_ref, eps_ref, *rest, layer_cfg, n_real, in_feat):
    """All GIN layers in one kernel.

    rest = (w_t_bf16, b, gamma, beta) * (num sublayers over all layers), out_ref.
    layer_cfg = tuple of (n_mlp_sublayers, residual_flag) per GIN layer (static).
    """
    out_ref = rest[-1]
    params = rest[:-1]

    np_pad, f_pad = out_ref.shape

    # Stage the unpadded node features into the padded [Np, Fp] layout entirely
    # in VMEM (out_ref doubles as the staging buffer), so the host never has to
    # materialize a padded copy of x in HBM per call.
    out_ref[...] = jnp.zeros_like(out_ref)
    out_ref[0:n_real, 0:in_feat] = x_ref[...].astype(jnp.float32)
    h = out_ref[...]                        # [Np, Fp] f32, zero-padded

    adj = adj_ref[...]                      # [Np, Np] bf16 (0/1 -> exact)

    # BatchNorm statistics must only see the real nodes, not the zero-padding.
    row_ids = jax.lax.broadcasted_iota(jnp.int32, (np_pad, 1), 0)
    mask = (row_ids < n_real).astype(jnp.float32)
    inv_n = 1.0 / float(n_real)

    p = 0
    for li, (n_mlp, residual) in enumerate(layer_cfg):
        eps = eps_ref[li]                   # per-layer trainable eps (SMEM scalar)
        x_in = h                            # f32 copy kept for (1+eps)*x and residual

        # Neighborhood aggregation on the MXU: bf16 inputs, f32 accumulate.
        h_bf = h.astype(jnp.bfloat16)
        agg = jnp.dot(adj, h_bf, preferred_element_type=jnp.float32)
        h = (1.0 + eps) * x_in + agg

        # MLP: Linear -> BatchNorm1d (batch stats) -> LeakyReLU per sublayer.
        for _ in range(n_mlp):
            w_t = params[p][...]            # [Fp, Fp] bf16 (pre-transposed, padded)
            b = params[p + 1][...]          # [1, Fp] f32
            gamma = params[p + 2][...]      # [1, Fp] f32
            beta = params[p + 3][...]       # [1, Fp] f32
            p += 4

            # bf16 x bf16 matmul, f32 accumulation on the MXU.
            h = jnp.dot(h.astype(jnp.bfloat16), w_t,
                        preferred_element_type=jnp.float32) + b

            # Fused BatchNorm: one masked sweep for mean and E[h^2], then a
            # single scale/shift pass (no (h - mean) full-tile temporary).
            hm = h * mask
            mean = jnp.sum(hm, axis=0, keepdims=True) * inv_n
            ex2 = jnp.sum(hm * h, axis=0, keepdims=True) * inv_n
            var = jnp.maximum(ex2 - mean * mean, 0.0)
            scale = gamma * jax.lax.rsqrt(var + BN_EPS)   # [1, Fp]
            shift = beta - mean * scale                   # [1, Fp]
            h = h * scale + shift
            h = jnp.where(h > 0, h, NEG_SLOPE * h)        # LeakyReLU(0.1)

        if residual:
            h = h + x_in

    out_ref[...] = h.astype(out_ref.dtype)


def prepare_gin(adj, layers):
    """One-time layout/parameter prep (hoisted out of the forward pass).

    layers: list of dicts {eps, mlp_params, residual}, mlp_params is a list of
    (W[out,in], b[out], gamma[out], beta[out]) in torch layout.
    """
    n_real = adj.shape[0]
    np_pad = _round_up(n_real, LANE)

    dims = []
    for layer in layers:
        for (w, _, _, _) in layer["mlp_params"]:
            dims += [int(w.shape[0]), int(w.shape[1])]
    f_pad = _round_up(max(dims), LANE)

    # Adjacency: zero-padded columns/rows for padded nodes (correctness guard),
    # stored bf16 (0/1 entries are exact in bf16).
    adj_p = jnp.zeros((np_pad, np_pad), jnp.float32).at[:n_real, :n_real].set(adj)
    adj_p = adj_p.astype(jnp.bfloat16)

    eps_arr = jnp.asarray([float(l["eps"]) for l in layers], jnp.float32)

    flat_params = []
    layer_cfg = []
    for layer in layers:
        layer_cfg.append((len(layer["mlp_params"]), bool(layer["residual"])))
        for (w, b, gamma, beta) in layer["mlp_params"]:
            fo, fi = int(w.shape[0]), int(w.shape[1])
            w_t = jnp.zeros((f_pad, f_pad), jnp.float32)
            w_t = w_t.at[:fi, :fo].set(jnp.transpose(w).astype(jnp.float32))
            flat_params += [
                w_t.astype(jnp.bfloat16),   # bf16 weights: half VMEM, MXU-native
                jnp.zeros((1, f_pad), jnp.float32).at[0, :fo].set(b.astype(jnp.float32)),
                jnp.zeros((1, f_pad), jnp.float32).at[0, :fo].set(gamma.astype(jnp.float32)),
                jnp.zeros((1, f_pad), jnp.float32).at[0, :fo].set(beta.astype(jnp.float32)),
            ]

    in_features = int(layers[0]["mlp_params"][0][0].shape[1])
    out_features = int(layers[-1]["mlp_params"][-1][0].shape[0])
    return dict(adj=adj_p, eps=eps_arr, params=flat_params,
                layer_cfg=tuple(layer_cfg), n_real=n_real, np_pad=np_pad,
                f_pad=f_pad, in_features=in_features, out_features=out_features)


def _vmem_limit_bytes(prep, x):
    """Size the scoped VMEM limit from the actual resident set (+ headroom)."""
    np_pad, f_pad = prep["np_pad"], prep["f_pad"]
    adj_b = prep["adj"].size * prep["adj"].dtype.itemsize
    x_b = x.size * 4
    out_b = np_pad * f_pad * 4
    param_b = sum(int(p.size) * p.dtype.itemsize for p in prep["params"])
    # live f32 temporaries inside the kernel (h, x_in, agg, hm, slack) + bf16 h
    temp_b = 5 * np_pad * f_pad * 4 + np_pad * f_pad * 2
    needed = adj_b + x_b + out_b + param_b + temp_b
    return min(128 * 1024 * 1024, max(int(needed * 1.25), 32 * 1024 * 1024))


def gin_forward_fused(x, prep):
    """Full GIN forward in a single Pallas call; returns [N, out_features]."""
    n_real = prep["n_real"]
    assert x.shape == (n_real, prep["in_features"])

    kernel = functools.partial(
        _gin_fused_kernel,
        layer_cfg=prep["layer_cfg"],
        n_real=n_real,
        in_feat=prep["in_features"],
    )

    vmem = pl.BlockSpec(memory_space=pltpu.MemorySpace.VMEM)
    smem = pl.BlockSpec(memory_space=pltpu.MemorySpace.SMEM)
    in_specs = [vmem, vmem, smem] + [vmem] * len(prep["params"])

    out = pl.pallas_call(
        kernel,
        out_shape=jax.ShapeDtypeStruct((prep["np_pad"], prep["f_pad"]), jnp.float32),
        in_specs=in_specs,
        out_specs=vmem,
        compiler_params=pltpu.CompilerParams(
            vmem_limit_bytes=_vmem_limit_bytes(prep, x)),
    )(prep["adj"], x, prep["eps"], *prep["params"])

    return out[:n_real, :prep["out_features"]]


def init_mlp_params(key, in_features, out_features, hidden_features):
    """Deterministic synthetic init of an MLP: list of (W, b, gamma, beta)."""
    dims = [in_features] + list(hidden_features) + [out_features]
    params = []
    for i in range(len(dims) - 1):
        key, k_w, k_b, k_g, k_be = jax.random.split(key, 5)
        fan_in = dims[i]
        w = jax.random.normal(k_w, (dims[i + 1], dims[i]), jnp.float32) / jnp.sqrt(
            jnp.float32(fan_in)
        )
        b = 0.1 * jax.random.normal(k_b, (dims[i + 1],), jnp.float32)
        gamma = 1.0 + 0.1 * jax.random.normal(k_g, (dims[i + 1],), jnp.float32)
        beta = 0.1 * jax.random.normal(k_be, (dims[i + 1],), jnp.float32)
        params.append((w, b, gamma, beta))
    return key, params


if __name__ == "__main__":
    # Small, module-consistent configuration.
    num_layers = 2
    in_features = 16
    out_features = 32
    hidden_features = [32]
    n_nodes = 16
    eps_init = 0.0            # GIN.__init__ default eps
    residual = True

    key = jax.random.PRNGKey(0)
    key, kx, ka = jax.random.split(key, 3)

    x = jax.random.normal(kx, (n_nodes, in_features), jnp.float32)
    adj = (jax.random.uniform(ka, (n_nodes, n_nodes)) < 0.3).astype(jnp.float32)
    adj = jnp.maximum(adj, adj.T)                               # symmetric
    adj = adj * (1.0 - jnp.eye(n_nodes, dtype=jnp.float32))     # no self loops

    layers = []
    # First layer: in_features != out_features -> first_layer_res = False.
    key, mlp0 = init_mlp_params(key, in_features, out_features, hidden_features)
    layers.append({"eps": eps_init, "mlp_params": mlp0,
                   "residual": (in_features == out_features)})
    for _ in range(num_layers - 1):
        key, mlp_i = init_mlp_params(key, out_features, out_features, hidden_features)
        layers.append({"eps": eps_init, "mlp_params": mlp_i, "residual": residual})

    # One-time prep (pad / transpose / bf16 cast), then a single fused kernel call.
    prep = prepare_gin(adj, layers)
    out = gin_forward_fused(x, prep)
    jax.block_until_ready(out)

    assert out.shape == (n_nodes, out_features)
    assert bool(jnp.all(jnp.isfinite(out)))
    print("KERNEL_OK")
</pallas_src>

<mosaic_0001>
module attributes {stable_mosaic.version = 11 : i64} {
  func.func @_gin_fused_kernel(%arg0: memref<128x128xbf16, #tpu.memory_space<vmem>>, %arg1: memref<16x16xf32, #tpu.memory_space<vmem>>, %arg2: memref<2xf32, #tpu.memory_space<smem>>, %arg3: memref<128x128xbf16, #tpu.memory_space<vmem>>, %arg4: memref<1x128xf32, #tpu.memory_space<vmem>>, %arg5: memref<1x128xf32, #tpu.memory_space<vmem>>, %arg6: memref<1x128xf32, #tpu.memory_space<vmem>>, %arg7: memref<128x128xbf16, #tpu.memory_space<vmem>>, %arg8: memref<1x128xf32, #tpu.memory_space<vmem>>, %arg9: memref<1x128xf32, #tpu.memory_space<vmem>>, %arg10: memref<1x128xf32, #tpu.memory_space<vmem>>, %arg11: memref<128x128xbf16, #tpu.memory_space<vmem>>, %arg12: memref<1x128xf32, #tpu.memory_space<vmem>>, %arg13: memref<1x128xf32, #tpu.memory_space<vmem>>, %arg14: memref<1x128xf32, #tpu.memory_space<vmem>>, %arg15: memref<128x128xbf16, #tpu.memory_space<vmem>>, %arg16: memref<1x128xf32, #tpu.memory_space<vmem>>, %arg17: memref<1x128xf32, #tpu.memory_space<vmem>>, %arg18: memref<1x128xf32, #tpu.memory_space<vmem>>, %arg19: memref<128x128xf32, #tpu.memory_space<vmem>>) attributes {dimension_semantics = [], scalar_prefetch = 0 : i64, scratch_operands = 0 : i64, tpu.core_type = #tpu.core_type<tc>} {
    %cst = arith.constant 0.000000e+00 : f32
    %0 = vector.broadcast %cst : f32 to vector<128x128xf32>
    %c0 = arith.constant 0 : index
    %c0_0 = arith.constant 0 : index
    %1 = vector.load %arg19[%c0, %c0_0] : memref<128x128xf32, #tpu.memory_space<vmem>>, vector<128x128xf32>
    tpu.vector_store %arg19[%c0, %c0_0], %0 {strides = array<i32>} : memref<128x128xf32, #tpu.memory_space<vmem>>, vector<128x128xf32>,
    %c0_1 = arith.constant 0 : index
    %c0_2 = arith.constant 0 : index
    %2 = vector.load %arg1[%c0_1, %c0_2] : memref<16x16xf32, #tpu.memory_space<vmem>>, vector<16x16xf32>
    %c0_3 = arith.constant 0 : index
    %c0_4 = arith.constant 0 : index
    %3 = vector.load %arg19[%c0_3, %c0_4] : memref<128x128xf32, #tpu.memory_space<vmem>>, vector<16x16xf32>
    tpu.vector_store %arg19[%c0_3, %c0_4], %2 {strides = array<i32>} : memref<128x128xf32, #tpu.memory_space<vmem>>, vector<16x16xf32>,
    %c0_5 = arith.constant 0 : index
    %c0_6 = arith.constant 0 : index
    %4 = vector.load %arg19[%c0_5, %c0_6] : memref<128x128xf32, #tpu.memory_space<vmem>>, vector<128x128xf32>
    %c0_7 = arith.constant 0 : index
    %c0_8 = arith.constant 0 : index
    %5 = vector.load %arg0[%c0_7, %c0_8] : memref<128x128xbf16, #tpu.memory_space<vmem>>, vector<128x128xbf16>
    %6 = tpu.iota {dimensions = array<i32: 0>} : vector<128x1xi32>
    %c16_i32 = arith.constant 16 : i32
    %7 = vector.broadcast %c16_i32 : i32 to vector<128x1xi32>
    %8 = arith.cmpi slt, %6, %7 : vector<128x1xi32>
    %9 = arith.extui %8 : vector<128x1xi1> to vector<128x1xi32>
    %10 = arith.sitofp %9 : vector<128x1xi32> to vector<128x1xf32>
    %c0_9 = arith.constant 0 : index
    %11 = memref.load %arg2[%c0_9] : memref<2xf32, #tpu.memory_space<smem>>
    %12 = arith.truncf %4 : vector<128x128xf32> to vector<128x128xbf16>
    %cst_10 = arith.constant dense<0.000000e+00> : vector<128x128xf32>
    %13 = tpu.matmul %5, %12, %cst_10 {dimension_numbers = #tpu.dot_dimension_numbers<[1], [0], [0], [1], [0, 0, 1, 1], [], []>} : vector<128x128xbf16>, vector<128x128xbf16>, vector<128x128xf32> -> vector<128x128xf32>
    %cst_11 = arith.constant 1.000000e+00 : f32
    %14 = arith.addf %cst_11, %11 : f32
    %15 = vector.broadcast %14 : f32 to vector<128x128xf32>
    %16 = arith.mulf %15, %4 : vector<128x128xf32>
    %17 = arith.addf %16, %13 : vector<128x128xf32>
    %c0_12 = arith.constant 0 : index
    %c0_13 = arith.constant 0 : index
    %18 = vector.load %arg3[%c0_12, %c0_13] : memref<128x128xbf16, #tpu.memory_space<vmem>>, vector<128x128xbf16>
    %c0_14 = arith.constant 0 : index
    %c0_15 = arith.constant 0 : index
    %19 = vector.load %arg4[%c0_14, %c0_15] : memref<1x128xf32, #tpu.memory_space<vmem>>, vector<1x128xf32>
    %c0_16 = arith.constant 0 : index
    %c0_17 = arith.constant 0 : index
    %20 = vector.load %arg5[%c0_16, %c0_17] : memref<1x128xf32, #tpu.memory_space<vmem>>, vector<1x128xf32>
    %c0_18 = arith.constant 0 : index
    %c0_19 = arith.constant 0 : index
    %21 = vector.load %arg6[%c0_18, %c0_19] : memref<1x128xf32, #tpu.memory_space<vmem>>, vector<1x128xf32>
    %22 = arith.truncf %17 : vector<128x128xf32> to vector<128x128xbf16>
    %cst_20 = arith.constant dense<0.000000e+00> : vector<128x128xf32>
    %23 = tpu.matmul %22, %18, %cst_20 {dimension_numbers = #tpu.dot_dimension_numbers<[1], [0], [0], [1], [0, 0, 1, 1], [], []>} : vector<128x128xbf16>, vector<128x128xbf16>, vector<128x128xf32> -> vector<128x128xf32>
    %24 = vector.broadcast %19 : vector<1x128xf32> to vector<128x128xf32>
    %25 = arith.addf %23, %24 : vector<128x128xf32>
    %26 = vector.broadcast %10 : vector<128x1xf32> to vector<128x128xf32>
    %27 = arith.mulf %25, %26 : vector<128x128xf32>
    %cst_21 = arith.constant dense<0.000000e+00> : vector<128xf32>
    %28 = vector.multi_reduction <add>, %27, %cst_21 [0] : vector<128x128xf32> to vector<128xf32>
    %29 = vector.shape_cast %28 : vector<128xf32> to vector<1x128xf32>
    %cst_22 = arith.constant 6.250000e-02 : f32
    %30 = vector.broadcast %cst_22 : f32 to vector<1x128xf32>
    %31 = arith.mulf %29, %30 : vector<1x128xf32>
    %32 = arith.mulf %27, %25 : vector<128x128xf32>
    %cst_23 = arith.constant dense<0.000000e+00> : vector<128xf32>
    %33 = vector.multi_reduction <add>, %32, %cst_23 [0] : vector<128x128xf32> to vector<128xf32>
    %34 = vector.shape_cast %33 : vector<128xf32> to vector<1x128xf32>
    %cst_24 = arith.constant 6.250000e-02 : f32
    %35 = vector.broadcast %cst_24 : f32 to vector<1x128xf32>
    %36 = arith.mulf %34, %35 : vector<1x128xf32>
    %37 = arith.mulf %31, %31 : vector<1x128xf32>
    %38 = arith.subf %36, %37 : vector<1x128xf32>
    %cst_25 = arith.constant 0.000000e+00 : f32
    %39 = vector.broadcast %cst_25 : f32 to vector<1x128xf32>
    %40 = arith.maximumf %38, %39 : vector<1x128xf32>
    %cst_26 = arith.constant 9.99999974E-6 : f32
    %41 = vector.broadcast %cst_26 : f32 to vector<1x128xf32>
    %42 = arith.addf %40, %41 : vector<1x128xf32>
    %43 = math.rsqrt %42 : vector<1x128xf32>
    %44 = arith.mulf %20, %43 : vector<1x128xf32>
    %45 = arith.mulf %31, %44 : vector<1x128xf32>
    %46 = arith.subf %21, %45 : vector<1x128xf32>
    %47 = vector.broadcast %44 : vector<1x128xf32> to vector<128x128xf32>
    %48 = arith.mulf %25, %47 : vector<128x128xf32>
    %49 = vector.broadcast %46 : vector<1x128xf32> to vector<128x128xf32>
    %50 = arith.addf %48, %49 : vector<128x128xf32>
    %cst_27 = arith.constant 0.000000e+00 : f32
    %51 = vector.broadcast %cst_27 : f32 to vector<128x128xf32>
    %52 = arith.cmpf ogt, %50, %51 : vector<128x128xf32>
    %cst_28 = arith.constant 1.000000e-01 : f32
    %53 = vector.broadcast %cst_28 : f32 to vector<128x128xf32>
    %54 = arith.mulf %53, %50 : vector<128x128xf32>
    %55 = arith.select %52, %50, %54 : vector<128x128xi1>, vector<128x128xf32>
    %c0_29 = arith.constant 0 : index
    %c0_30 = arith.constant 0 : index
    %56 = vector.load %arg7[%c0_29, %c0_30] : memref<128x128xbf16, #tpu.memory_space<vmem>>, vector<128x128xbf16>
    %c0_31 = arith.constant 0 : index
    %c0_32 = arith.constant 0 : index
    %57 = vector.load %arg8[%c0_31, %c0_32] : memref<1x128xf32, #tpu.memory_space<vmem>>, vector<1x128xf32>
    %c0_33 = arith.constant 0 : index
    %c0_34 = arith.constant 0 : index
    %58 = vector.load %arg9[%c0_33, %c0_34] : memref<1x128xf32, #tpu.memory_space<vmem>>, vector<1x128xf32>
    %c0_35 = arith.constant 0 : index
    %c0_36 = arith.constant 0 : index
    %59 = vector.load %arg10[%c0_35, %c0_36] : memref<1x128xf32, #tpu.memory_space<vmem>>, vector<1x128xf32>
    %60 = arith.truncf %55 : vector<128x128xf32> to vector<128x128xbf16>
    %cst_37 = arith.constant dense<0.000000e+00> : vector<128x128xf32>
    %61 = tpu.matmul %60, %56, %cst_37 {dimension_numbers = #tpu.dot_dimension_numbers<[1], [0], [0], [1], [0, 0, 1, 1], [], []>} : vector<128x128xbf16>, vector<128x128xbf16>, vector<128x128xf32> -> vector<128x128xf32>
    %62 = vector.broadcast %57 : vector<1x128xf32> to vector<128x128xf32>
    %63 = arith.addf %61, %62 : vector<128x128xf32>
    %64 = vector.broadcast %10 : vector<128x1xf32> to vector<128x128xf32>
    %65 = arith.mulf %63, %64 : vector<128x128xf32>
    %cst_38 = arith.constant dense<0.000000e+00> : vector<128xf32>
    %66 = vector.multi_reduction <add>, %65, %cst_38 [0] : vector<128x128xf32> to vector<128xf32>
    %67 = vector.shape_cast %66 : vector<128xf32> to vector<1x128xf32>
    %cst_39 = arith.constant 6.250000e-02 : f32
    %68 = vector.broadcast %cst_39 : f32 to vector<1x128xf32>
    %69 = arith.mulf %67, %68 : vector<1x128xf32>
    %70 = arith.mulf %65, %63 : vector<128x128xf32>
    %cst_40 = arith.constant dense<0.000000e+00> : vector<128xf32>
    %71 = vector.multi_reduction <add>, %70, %cst_40 [0] : vector<128x128xf32> to vector<128xf32>
    %72 = vector.shape_cast %71 : vector<128xf32> to vector<1x128xf32>
    %cst_41 = arith.constant 6.250000e-02 : f32
    %73 = vector.broadcast %cst_41 : f32 to vector<1x128xf32>
    %74 = arith.mulf %72, %73 : vector<1x128xf32>
    %75 = arith.mulf %69, %69 : vector<1x128xf32>
    %76 = arith.subf %74, %75 : vector<1x128xf32>
    %cst_42 = arith.constant 0.000000e+00 : f32
    %77 = vector.broadcast %cst_42 : f32 to vector<1x128xf32>
    %78 = arith.maximumf %76, %77 : vector<1x128xf32>
    %cst_43 = arith.constant 9.99999974E-6 : f32
    %79 = vector.broadcast %cst_43 : f32 to vector<1x128xf32>
    %80 = arith.addf %78, %79 : vector<1x128xf32>
    %81 = math.rsqrt %80 : vector<1x128xf32>
    %82 = arith.mulf %58, %81 : vector<1x128xf32>
    %83 = arith.mulf %69, %82 : vector<1x128xf32>
    %84 = arith.subf %59, %83 : vector<1x128xf32>
    %85 = vector.broadcast %82 : vector<1x128xf32> to vector<128x128xf32>
    %86 = arith.mulf %63, %85 : vector<128x128xf32>
    %87 = vector.broadcast %84 : vector<1x128xf32> to vector<128x128xf32>
    %88 = arith.addf %86, %87 : vector<128x128xf32>
    %cst_44 = arith.constant 0.000000e+00 : f32
    %89 = vector.broadcast %cst_44 : f32 to vector<128x128xf32>
    %90 = arith.cmpf ogt, %88, %89 : vector<128x128xf32>
    %cst_45 = arith.constant 1.000000e-01 : f32
    %91 = vector.broadcast %cst_45 : f32 to vector<128x128xf32>
    %92 = arith.mulf %91, %88 : vector<128x128xf32>
    %93 = arith.select %90, %88, %92 : vector<128x128xi1>, vector<128x128xf32>
    %c1 = arith.constant 1 : index
    %94 = memref.load %arg2[%c1] : memref<2xf32, #tpu.memory_space<smem>>
    %95 = arith.truncf %93 : vector<128x128xf32> to vector<128x128xbf16>
    %cst_46 = arith.constant dense<0.000000e+00> : vector<128x128xf32>
    %96 = tpu.matmul %5, %95, %cst_46 {dimension_numbers = #tpu.dot_dimension_numbers<[1], [0], [0], [1], [0, 0, 1, 1], [], []>} : vector<128x128xbf16>, vector<128x128xbf16>, vector<128x128xf32> -> vector<128x128xf32>
    %cst_47 = arith.constant 1.000000e+00 : f32
    %97 = arith.addf %cst_47, %94 : f32
    %98 = vector.broadcast %97 : f32 to vector<128x128xf32>
    %99 = arith.mulf %98, %93 : vector<128x128xf32>
    %100 = arith.addf %99, %96 : vector<128x128xf32>
    %c0_48 = arith.constant 0 : index
    %c0_49 = arith.constant 0 : index
    %101 = vector.load %arg11[%c0_48, %c0_49] : memref<128x128xbf16, #tpu.memory_space<vmem>>, vector<128x128xbf16>
    %c0_50 = arith.constant 0 : index
    %c0_51 = arith.constant 0 : index
    %102 = vector.load %arg12[%c0_50, %c0_51] : memref<1x128xf32, #tpu.memory_space<vmem>>, vector<1x128xf32>
    %c0_52 = arith.constant 0 : index
    %c0_53 = arith.constant 0 : index
    %103 = vector.load %arg13[%c0_52, %c0_53] : memref<1x128xf32, #tpu.memory_space<vmem>>, vector<1x128xf32>
    %c0_54 = arith.constant 0 : index
    %c0_55 = arith.constant 0 : index
    %104 = vector.load %arg14[%c0_54, %c0_55] : memref<1x128xf32, #tpu.memory_space<vmem>>, vector<1x128xf32>
    %105 = arith.truncf %100 : vector<128x128xf32> to vector<128x128xbf16>
    %cst_56 = arith.constant dense<0.000000e+00> : vector<128x128xf32>
    %106 = tpu.matmul %105, %101, %cst_56 {dimension_numbers = #tpu.dot_dimension_numbers<[1], [0], [0], [1], [0, 0, 1, 1], [], []>} : vector<128x128xbf16>, vector<128x128xbf16>, vector<128x128xf32> -> vector<128x128xf32>
    %107 = vector.broadcast %102 : vector<1x128xf32> to vector<128x128xf32>
    %108 = arith.addf %106, %107 : vector<128x128xf32>
    %109 = vector.broadcast %10 : vector<128x1xf32> to vector<128x128xf32>
    %110 = arith.mulf %108, %109 : vector<128x128xf32>
    %cst_57 = arith.constant dense<0.000000e+00> : vector<128xf32>
    %111 = vector.multi_reduction <add>, %110, %cst_57 [0] : vector<128x128xf32> to vector<128xf32>
    %112 = vector.shape_cast %111 : vector<128xf32> to vector<1x128xf32>
    %cst_58 = arith.constant 6.250000e-02 : f32
    %113 = vector.broadcast %cst_58 : f32 to vector<1x128xf32>
    %114 = arith.mulf %112, %113 : vector<1x128xf32>
    %115 = arith.mulf %110, %108 : vector<128x128xf32>
    %cst_59 = arith.constant dense<0.000000e+00> : vector<128xf32>
    %116 = vector.multi_reduction <add>, %115, %cst_59 [0] : vector<128x128xf32> to vector<128xf32>
    %117 = vector.shape_cast %116 : vector<128xf32> to vector<1x128xf32>
    %cst_60 = arith.constant 6.250000e-02 : f32
    %118 = vector.broadcast %cst_60 : f32 to vector<1x128xf32>
    %119 = arith.mulf %117, %118 : vector<1x128xf32>
    %120 = arith.mulf %114, %114 : vector<1x128xf32>
    %121 = arith.subf %119, %120 : vector<1x128xf32>
    %cst_61 = arith.constant 0.000000e+00 : f32
    %122 = vector.broadcast %cst_61 : f32 to vector<1x128xf32>
    %123 = arith.maximumf %121, %122 : vector<1x128xf32>
    %cst_62 = arith.constant 9.99999974E-6 : f32
    %124 = vector.broadcast %cst_62 : f32 to vector<1x128xf32>
    %125 = arith.addf %123, %124 : vector<1x128xf32>
    %126 = math.rsqrt %125 : vector<1x128xf32>
    %127 = arith.mulf %103, %126 : vector<1x128xf32>
    %128 = arith.mulf %114, %127 : vector<1x128xf32>
    %129 = arith.subf %104, %128 : vector<1x128xf32>
    %130 = vector.broadcast %127 : vector<1x128xf32> to vector<128x128xf32>
    %131 = arith.mulf %108, %130 : vector<128x128xf32>
    %132 = vector.broadcast %129 : vector<1x128xf32> to vector<128x128xf32>
    %133 = arith.addf %131, %132 : vector<128x128xf32>
    %cst_63 = arith.constant 0.000000e+00 : f32
    %134 = vector.broadcast %cst_63 : f32 to vector<128x128xf32>
    %135 = arith.cmpf ogt, %133, %134 : vector<128x128xf32>
    %cst_64 = arith.constant 1.000000e-01 : f32
    %136 = vector.broadcast %cst_64 : f32 to vector<128x128xf32>
    %137 = arith.mulf %136, %133 : vector<128x128xf32>
    %138 = arith.select %135, %133, %137 : vector<128x128xi1>, vector<128x128xf32>
    %c0_65 = arith.constant 0 : index
    %c0_66 = arith.constant 0 : index
    %139 = vector.load %arg15[%c0_65, %c0_66] : memref<128x128xbf16, #tpu.memory_space<vmem>>, vector<128x128xbf16>
    %c0_67 = arith.constant 0 : index
    %c0_68 = arith.constant 0 : index
    %140 = vector.load %arg16[%c0_67, %c0_68] : memref<1x128xf32, #tpu.memory_space<vmem>>, vector<1x128xf32>
    %c0_69 = arith.constant 0 : index
    %c0_70 = arith.constant 0 : index
    %141 = vector.load %arg17[%c0_69, %c0_70] : memref<1x128xf32, #tpu.memory_space<vmem>>, vector<1x128xf32>
    %c0_71 = arith.constant 0 : index
    %c0_72 = arith.constant 0 : index
    %142 = vector.load %arg18[%c0_71, %c0_72] : memref<1x128xf32, #tpu.memory_space<vmem>>, vector<1x128xf32>
    %143 = arith.truncf %138 : vector<128x128xf32> to vector<128x128xbf16>
    %cst_73 = arith.constant dense<0.000000e+00> : vector<128x128xf32>
    %144 = tpu.matmul %143, %139, %cst_73 {dimension_numbers = #tpu.dot_dimension_numbers<[1], [0], [0], [1], [0, 0, 1, 1], [], []>} : vector<128x128xbf16>, vector<128x128xbf16>, vector<128x128xf32> -> vector<128x128xf32>
    %145 = vector.broadcast %140 : vector<1x128xf32> to vector<128x128xf32>
    %146 = arith.addf %144, %145 : vector<128x128xf32>
    %147 = vector.broadcast %10 : vector<128x1xf32> to vector<128x128xf32>
    %148 = arith.mulf %146, %147 : vector<128x128xf32>
    %cst_74 = arith.constant dense<0.000000e+00> : vector<128xf32>
    %149 = vector.multi_reduction <add>, %148, %cst_74 [0] : vector<128x128xf32> to vector<128xf32>
    %150 = vector.shape_cast %149 : vector<128xf32> to vector<1x128xf32>
    %cst_75 = arith.constant 6.250000e-02 : f32
    %151 = vector.broadcast %cst_75 : f32 to vector<1x128xf32>
    %152 = arith.mulf %150, %151 : vector<1x128xf32>
    %153 = arith.mulf %148, %146 : vector<128x128xf32>
    %cst_76 = arith.constant dense<0.000000e+00> : vector<128xf32>
    %154 = vector.multi_reduction <add>, %153, %cst_76 [0] : vector<128x128xf32> to vector<128xf32>
    %155 = vector.shape_cast %154 : vector<128xf32> to vector<1x128xf32>
    %cst_77 = arith.constant 6.250000e-02 : f32
    %156 = vector.broadcast %cst_77 : f32 to vector<1x128xf32>
    %157 = arith.mulf %155, %156 : vector<1x128xf32>
    %158 = arith.mulf %152, %152 : vector<1x128xf32>
    %159 = arith.subf %157, %158 : vector<1x128xf32>
    %cst_78 = arith.constant 0.000000e+00 : f32
    %160 = vector.broadcast %cst_78 : f32 to vector<1x128xf32>
    %161 = arith.maximumf %159, %160 : vector<1x128xf32>
    %cst_79 = arith.constant 9.99999974E-6 : f32
    %162 = vector.broadcast %cst_79 : f32 to vector<1x128xf32>
    %163 = arith.addf %161, %162 : vector<1x128xf32>
    %164 = math.rsqrt %163 : vector<1x128xf32>
    %165 = arith.mulf %141, %164 : vector<1x128xf32>
    %166 = arith.mulf %152, %165 : vector<1x128xf32>
    %167 = arith.subf %142, %166 : vector<1x128xf32>
    %168 = vector.broadcast %165 : vector<1x128xf32> to vector<128x128xf32>
    %169 = arith.mulf %146, %168 : vector<128x128xf32>
    %170 = vector.broadcast %167 : vector<1x128xf32> to vector<128x128xf32>
    %171 = arith.addf %169, %170 : vector<128x128xf32>
    %cst_80 = arith.constant 0.000000e+00 : f32
    %172 = vector.broadcast %cst_80 : f32 to vector<128x128xf32>
    %173 = arith.cmpf ogt, %171, %172 : vector<128x128xf32>
    %cst_81 = arith.constant 1.000000e-01 : f32
    %174 = vector.broadcast %cst_81 : f32 to vector<128x128xf32>
    %175 = arith.mulf %174, %171 : vector<128x128xf32>
    %176 = arith.select %173, %171, %175 : vector<128x128xi1>, vector<128x128xf32>
    %177 = arith.addf %176, %93 : vector<128x128xf32>
    %c0_82 = arith.constant 0 : index
    %c0_83 = arith.constant 0 : index
    %178 = vector.load %arg19[%c0_82, %c0_83] : memref<128x128xf32, #tpu.memory_space<vmem>>, vector<128x128xf32>
    tpu.vector_store %arg19[%c0_82, %c0_83], %177 {strides = array<i32>} : memref<128x128xf32, #tpu.memory_space<vmem>>, vector<128x128xf32>,
    return
  }
}

</mosaic_0001>

<llo_original>
// kernel: tpu_custom_call.1
$region0: #{tpu_custom_call.1}
  #allocation0 [shape = 'u32[]', space=smem, size = 0x4, offset = 0x4, fixed_abs, tag = 'smem constant byte address 0x4 - core index']
  #allocation1 [shape = 'u32[144,128]{1,0:T(1,128)}', space=vmem, size = 0x12000, scoped, tag = 'internal scratch']
  %s0 = inlined_call_operand.hbm [shape: bf16[128,128], index: 0, kind: input, shape index: {}]
  %s1 = inlined_call_operand.hbm [shape: f32[16,16], index: 1, kind: input, shape index: {}]
  %s2 = inlined_call_operand.vmem [shape: f32[2], index: 2, kind: input, shape index: {}]
  %s3 = inlined_call_operand.hbm [shape: bf16[128,128], index: 3, kind: input, shape index: {}]
  %s4 = inlined_call_operand.vmem [shape: f32[1,128], index: 4, kind: input, shape index: {}]
  %s5 = inlined_call_operand.vmem [shape: f32[1,128], index: 5, kind: input, shape index: {}]
  %s6 = inlined_call_operand.vmem [shape: f32[1,128], index: 6, kind: input, shape index: {}]
  %s7 = inlined_call_operand.hbm [shape: bf16[128,128], index: 7, kind: input, shape index: {}]
  %s8 = inlined_call_operand.vmem [shape: f32[1,128], index: 8, kind: input, shape index: {}]
  %s9 = inlined_call_operand.vmem [shape: f32[1,128], index: 9, kind: input, shape index: {}]
  %s10 = inlined_call_operand.vmem [shape: f32[1,128], index: 10, kind: input, shape index: {}]
  %s11 = inlined_call_operand.hbm [shape: bf16[128,128], index: 11, kind: input, shape index: {}]
  %s12 = inlined_call_operand.vmem [shape: f32[1,128], index: 12, kind: input, shape index: {}]
  %s13 = inlined_call_operand.vmem [shape: f32[1,128], index: 13, kind: input, shape index: {}]
  %s14 = inlined_call_operand.vmem [shape: f32[1,128], index: 14, kind: input, shape index: {}]
  %s15 = inlined_call_operand.hbm [shape: bf16[128,128], index: 15, kind: input, shape index: {}]
  %s16 = inlined_call_operand.vmem [shape: f32[1,128], index: 16, kind: input, shape index: {}]
  %s17 = inlined_call_operand.vmem [shape: f32[1,128], index: 17, kind: input, shape index: {}]
  %s18 = inlined_call_operand.vmem [shape: f32[1,128], index: 18, kind: input, shape index: {}]
  %s19 = inlined_call_operand.hbm [shape: f32[128,128], index: 19, kind: output, shape index: {}]
  %s20 = sld [smem:[#allocation0]]
  $region114: #{tpu_custom_call.1} parent=0
    _
  %s22 = ssub.s32 1, %s20
  %s23 = scalar_select 0, %s22, %s20
  $region1: #{tpu_custom_call.1} parent=0
    #allocation2 [shape = 'u8[32768]{0}', space=vmem, size = 0x8000, scoped, tag = 'input window, operand 0, single buffered']
    #allocation3 [shape = 's32[1]{0}', space=sflag, size = 0x4, scoped, tag = 'scoped memory for tpu_custom_call.1']
    #allocation4 [shape = 's32[1]{0}', space=sflag, size = 0x4, scoped, tag = 'scoped memory for tpu_custom_call.1']
    #allocation5 [shape = 's32[1]{0}', space=sflag, size = 0x4, scoped, tag = 'scoped memory for tpu_custom_call.1']
    #allocation6 [shape = 'u8[8192]{0}', space=vmem, size = 0x2000, scoped, tag = 'input window, operand 1, single buffered']
    #allocation7 [shape = 's32[1]{0}', space=sflag, size = 0x4, scoped, tag = 'scoped memory for tpu_custom_call.1']
    #allocation8 [shape = 'u8[512]{0}', space=smem, size = 0x200, scoped, tag = 'input window, operand 2, single buffered']
    #allocation9 [shape = 'u8[32768]{0}', space=vmem, size = 0x8000, scoped, tag = 'input window, operand 3, single buffered']
    #allocation10 [shape = 'u8[32768]{0}', space=vmem, size = 0x8000, scoped, tag = 'input window, operand 7, single buffered']
    #allocation11 [shape = 's32[1]{0}', space=sflag, size = 0x4, scoped, tag = 'scoped memory for tpu_custom_call.1']
    #allocation12 [shape = 'u8[32768]{0}', space=vmem, size = 0x8000, scoped, tag = 'input window, operand 11, single buffered']
    #allocation13 [shape = 'u8[32768]{0}', space=vmem, size = 0x8000, scoped, tag = 'input window, operand 15, single buffered']
    #allocation14 [shape = 's32[1]{0}', space=sflag, size = 0x4, scoped, tag = 'scoped memory for tpu_custom_call.1']
    #allocation15 [shape = 'u8[65536]{0}', space=vmem, size = 0x10000, scoped, tag = 'output window, operand 0, single buffered']
    %24 = vsyncpa [#allocation3], 0
    %25 = vsyncpa [#allocation7], 0
    %26 = vsyncpa [#allocation5], 0
    %27 = vsyncpa [#allocation11], 0
    %28 = vsyncpa [#allocation14], 0
    %29 = vsyncpa [#allocation4], 0
    // Predicated region
    $region2: #{tpu_custom_call.1} parent=1 // pred_check
      _
    $region3: #{tpu_custom_call.1} parent=1 // pred_check_branch
      %31 = sbr.rel (0) target = $region5
    $region4: #{tpu_custom_call.1} parent=1 // pred_region
      %s33 = ssub.s32 1024, 1024
      %34 = vsyncadd [#allocation3], %s33
      %s35 = sshll.u32 [#allocation2], 4
      %s36 = int_to_ptr.vmem [resolvable:$true] %s35
      %41 = dma.hbm_to_vmem [thread:$0]  %s0, 1024, %s36, [#allocation3], 64, 64, 4
    $region5: #{tpu_custom_call.1} parent=1 // pred_fallthru
      _
    // Predicated region
    $region6: #{tpu_custom_call.1} parent=1 // pred_check
      _
    $region7: #{tpu_custom_call.1} parent=1 // pred_check_branch
      %43 = sbr.rel (0) target = $region9
    $region8: #{tpu_custom_call.1} parent=1 // pred_region
      %s45 = ssub.s32 256, 256
      %46 = vsyncadd [#allocation7], %s45
      %s47 = sshll.u32 [#allocation6], 4
      %s48 = int_to_ptr.vmem [resolvable:$true] %s47
      %53 = dma.hbm_to_vmem [thread:$0]  %s1, 256, %s48, [#allocation7], 128, 128, 8
    $region9: #{tpu_custom_call.1} parent=1 // pred_fallthru
      _
    // Predicated region
    $region10: #{tpu_custom_call.1} parent=1 // pred_check
      _
    $region11: #{tpu_custom_call.1} parent=1 // pred_check_branch
      %55 = sbr.rel (0) target = $region13
    $region12: #{tpu_custom_call.1} parent=1 // pred_region
      %s57 = ssub.s32 16, 16
      %58 = vsyncadd [#allocation5], %s57
      %s60 = sshll.u32 %s2, 4
      %s61 = int_to_ptr.vmem [resolvable:$true] %s60
      %63 = dma.vmem_to_smem %s61, 16, [#allocation8], [#allocation5]
    $region13: #{tpu_custom_call.1} parent=1 // pred_fallthru
      _
    // Predicated region
    $region14: #{tpu_custom_call.1} parent=1 // pred_check
      _
    $region15: #{tpu_custom_call.1} parent=1 // pred_check_branch
      %65 = sbr.rel (0) target = $region17
    $region16: #{tpu_custom_call.1} parent=1 // pred_region
      %s67 = ssub.s32 1024, 1024
      %68 = vsyncadd [#allocation7], %s67
      %s69 = sshll.u32 [#allocation9], 4
      %s70 = int_to_ptr.vmem [resolvable:$true] %s69
      %75 = dma.hbm_to_vmem [thread:$0]  %s3, 1024, %s70, [#allocation7], 64, 64, 4
    $region17: #{tpu_custom_call.1} parent=1 // pred_fallthru
      _
    // Predicated region
    $region18: #{tpu_custom_call.1} parent=1 // pred_check
      _
    $region19: #{tpu_custom_call.1} parent=1 // pred_check_branch
      %77 = sbr.rel (0) target = $region21
    $region20: #{tpu_custom_call.1} parent=1 // pred_region
      _
    $region21: #{tpu_custom_call.1} parent=1 // pred_fallthru
      _
    // Predicated region
    $region22: #{tpu_custom_call.1} parent=1 // pred_check
      _
    $region23: #{tpu_custom_call.1} parent=1 // pred_check_branch
      %79 = sbr.rel (0) target = $region25
    $region24: #{tpu_custom_call.1} parent=1 // pred_region
      _
    $region25: #{tpu_custom_call.1} parent=1 // pred_fallthru
      _
    // Predicated region
    $region26: #{tpu_custom_call.1} parent=1 // pred_check
      _
    $region27: #{tpu_custom_call.1} parent=1 // pred_check_branch
      %81 = sbr.rel (0) target = $region29
    $region28: #{tpu_custom_call.1} parent=1 // pred_region
      _
    $region29: #{tpu_custom_call.1} parent=1 // pred_fallthru
      _
    // Predicated region
    $region30: #{tpu_custom_call.1} parent=1 // pred_check
      _
    $region31: #{tpu_custom_call.1} parent=1 // pred_check_branch
      %83 = sbr.rel (0) target = $region33
    $region32: #{tpu_custom_call.1} parent=1 // pred_region
      %s85 = ssub.s32 1024, 1024
      %86 = vsyncadd [#allocation11], %s85
      %s87 = sshll.u32 [#allocation10], 4
      %s88 = int_to_ptr.vmem [resolvable:$true] %s87
      %93 = dma.hbm_to_vmem [thread:$0]  %s7, 1024, %s88, [#allocation11], 64, 64, 4
    $region33: #{tpu_custom_call.1} parent=1 // pred_fallthru
      _
    // Predicated region
    $region34: #{tpu_custom_call.1} parent=1 // pred_check
      _
    $region35: #{tpu_custom_call.1} parent=1 // pred_check_branch
      %95 = sbr.rel (0) target = $region37
    $region36: #{tpu_custom_call.1} parent=1 // pred_region
      _
    $region37: #{tpu_custom_call.1} parent=1 // pred_fallthru
      _
    // Predicated region
    $region38: #{tpu_custom_call.1} parent=1 // pred_check
      _
    $region39: #{tpu_custom_call.1} parent=1 // pred_check_branch
      %97 = sbr.rel (0) target = $region41
    $region40: #{tpu_custom_call.1} parent=1 // pred_region
      _
    $region41: #{tpu_custom_call.1} parent=1 // pred_fallthru
      _
    // Predicated region
    $region42: #{tpu_custom_call.1} parent=1 // pred_check
      _
    $region43: #{tpu_custom_call.1} parent=1 // pred_check_branch
      %99 = sbr.rel (0) target = $region45
    $region44: #{tpu_custom_call.1} parent=1 // pred_region
      _
    $region45: #{tpu_custom_call.1} parent=1 // pred_fallthru
      _
    // Predicated region
    $region46: #{tpu_custom_call.1} parent=1 // pred_check
      _
    $region47: #{tpu_custom_call.1} parent=1 // pred_check_branch
      %101 = sbr.rel (0) target = $region49
    $region48: #{tpu_custom_call.1} parent=1 // pred_region
      %s103 = ssub.s32 1024, 1024
      %104 = vsyncadd [#allocation11], %s103
      %s105 = sshll.u32 [#allocation12], 4
      %s106 = int_to_ptr.vmem [resolvable:$true] %s105
      %111 = dma.hbm_to_vmem [thread:$0]  %s11, 1024, %s106, [#allocation11], 64, 64, 4
    $region49: #{tpu_custom_call.1} parent=1 // pred_fallthru
      _
    // Predicated region
    $region50: #{tpu_custom_call.1} parent=1 // pred_check
      _
    $region51: #{tpu_custom_call.1} parent=1 // pred_check_branch
      %113 = sbr.rel (0) target = $region53
    $region52: #{tpu_custom_call.1} parent=1 // pred_region
      _
    $region53: #{tpu_custom_call.1} parent=1 // pred_fallthru
      _
    // Predicated region
    $region54: #{tpu_custom_call.1} parent=1 // pred_check
      _
    $region55: #{tpu_custom_call.1} parent=1 // pred_check_branch
      %115 = sbr.rel (0) target = $region57
    $region56: #{tpu_custom_call.1} parent=1 // pred_region
      _
    $region57: #{tpu_custom_call.1} parent=1 // pred_fallthru
      _
    // Predicated region
    $region58: #{tpu_custom_call.1} parent=1 // pred_check
      _
    $region59: #{tpu_custom_call.1} parent=1 // pred_check_branch
      %117 = sbr.rel (0) target = $region61
    $region60: #{tpu_custom_call.1} parent=1 // pred_region
      _
    $region61: #{tpu_custom_call.1} parent=1 // pred_fallthru
      _
    // Predicated region
    $region62: #{tpu_custom_call.1} parent=1 // pred_check
      _
    $region63: #{tpu_custom_call.1} parent=1 // pred_check_branch
      %119 = sbr.rel (0) target = $region65
    $region64: #{tpu_custom_call.1} parent=1 // pred_region
      %s121 = ssub.s32 1024, 1024
      %122 = vsyncadd [#allocation14], %s121
      %s123 = sshll.u32 [#allocation13], 4
      %s124 = int_to_ptr.vmem [resolvable:$true] %s123
      %129 = dma.hbm_to_vmem [thread:$0]  %s15, 1024, %s124, [#allocation14], 64, 64, 4
    $region65: #{tpu_custom_call.1} parent=1 // pred_fallthru
      _
    // Predicated region
    $region66: #{tpu_custom_call.1} parent=1 // pred_check
      _
    $region67: #{tpu_custom_call.1} parent=1 // pred_check_branch
      %131 = sbr.rel (0) target = $region69
    $region68: #{tpu_custom_call.1} parent=1 // pred_region
      _
    $region69: #{tpu_custom_call.1} parent=1 // pred_fallthru
      _
    // Predicated region
    $region70: #{tpu_custom_call.1} parent=1 // pred_check
      _
    $region71: #{tpu_custom_call.1} parent=1 // pred_check_branch
      %133 = sbr.rel (0) target = $region73
    $region72: #{tpu_custom_call.1} parent=1 // pred_region
      _
    $region73: #{tpu_custom_call.1} parent=1 // pred_fallthru
      _
    // Predicated region
    $region74: #{tpu_custom_call.1} parent=1 // pred_check
      _
    $region75: #{tpu_custom_call.1} parent=1 // pred_check_branch
      %135 = sbr.rel (0) target = $region77
    $region76: #{tpu_custom_call.1} parent=1 // pred_region
      _
    $region77: #{tpu_custom_call.1} parent=1 // pred_fallthru
      _
    // Predicated region
    $region78: #{tpu_custom_call.1} parent=1 // pred_check
      _
    $region79: #{tpu_custom_call.1} parent=1 // pred_check_branch
      %137 = sbr.rel (0) target = $region81
    $region80: #{tpu_custom_call.1} parent=1 // pred_region
      %138 = dma.done [#allocation3], 1024
    $region81: #{tpu_custom_call.1} parent=1 // pred_fallthru
      _
    // Predicated region
    $region82: #{tpu_custom_call.1} parent=1 // pred_check
      _
    $region83: #{tpu_custom_call.1} parent=1 // pred_check_branch
      %140 = sbr.rel (0) target = $region85
    $region84: #{tpu_custom_call.1} parent=1 // pred_region
      %141 = dma.done [#allocation7], 256
    $region85: #{tpu_custom_call.1} parent=1 // pred_fallthru
      _
    // Predicated region
    $region86: #{tpu_custom_call.1} parent=1 // pred_check
      _
    $region87: #{tpu_custom_call.1} parent=1 // pred_check_branch
      %143 = sbr.rel (0) target = $region89
    $region88: #{tpu_custom_call.1} parent=1 // pred_region
      %144 = dma.done [#allocation5], 16
    $region89: #{tpu_custom_call.1} parent=1 // pred_fallthru
      _
    // Predicated region
    $region90: #{tpu_custom_call.1} parent=1 // pred_check
      _
    $region91: #{tpu_custom_call.1} parent=1 // pred_check_branch
      %146 = sbr.rel (0) target = $region93
    $region92: #{tpu_custom_call.1} parent=1 // pred_region
      %147 = dma.done [#allocation7], 1024
    $region93: #{tpu_custom_call.1} parent=1 // pred_fallthru
      _
    // Predicated region
    $region94: #{tpu_custom_call.1} parent=1 // pred_check
      _
    $region95: #{tpu_custom_call.1} parent=1 // pred_check_branch
      %149 = sbr.rel (0) target = $region97
    $region96: #{tpu_custom_call.1} parent=1 // pred_region
      %150 = dma.done [#allocation11], 1024
    $region97: #{tpu_custom_call.1} parent=1 // pred_fallthru
      _
    // Predicated region
    $region98: #{tpu_custom_call.1} parent=1 // pred_check
      _
    $region99: #{tpu_custom_call.1} parent=1 // pred_check_branch
      %152 = sbr.rel (0) target = $region101
    $region100: #{tpu_custom_call.1} parent=1 // pred_region
      %153 = dma.done [#allocation11], 1024
    $region101: #{tpu_custom_call.1} parent=1 // pred_fallthru
      _
    // Predicated region
    $region102: #{tpu_custom_call.1} parent=1 // pred_check
      _
    $region103: #{tpu_custom_call.1} parent=1 // pred_check_branch
      %155 = sbr.rel (0) target = $region105
    $region104: #{tpu_custom_call.1} parent=1 // pred_region
      %156 = dma.done [#allocation14], 1024
    $region105: #{tpu_custom_call.1} parent=1 // pred_fallthru
      _
    %157 = sfence
    %159 = vst [vmem:[#allocation15] sm:$0xff] 0.0
    %160 = vst [vmem:[#allocation15 + $0x8] sm:$0xff] 0.0
    %161 = vst [vmem:[#allocation15 + $0x10] sm:$0xff] 0.0
    %162 = vst [vmem:[#allocation15 + $0x18] sm:$0xff] 0.0
    %163 = vst [vmem:[#allocation15 + $0x20] sm:$0xff] 0.0
    %164 = vst [vmem:[#allocation15 + $0x28] sm:$0xff] 0.0
    %165 = vst [vmem:[#allocation15 + $0x30] sm:$0xff] 0.0
    %166 = vst [vmem:[#allocation15 + $0x38] sm:$0xff] 0.0
    %167 = vst [vmem:[#allocation15 + $0x40] sm:$0xff] 0.0
    %168 = vst [vmem:[#allocation15 + $0x48] sm:$0xff] 0.0
    %169 = vst [vmem:[#allocation15 + $0x50] sm:$0xff] 0.0
    %170 = vst [vmem:[#allocation15 + $0x58] sm:$0xff] 0.0
    %171 = vst [vmem:[#allocation15 + $0x60] sm:$0xff] 0.0
    %172 = vst [vmem:[#allocation15 + $0x68] sm:$0xff] 0.0
    %173 = vst [vmem:[#allocation15 + $0x70] sm:$0xff] 0.0
    %174 = vst [vmem:[#allocation15 + $0x78] sm:$0xff] 0.0
    %v175 = vld [vmem:[#allocation6] sm:$0xff]
    %v176 = vld [vmem:[#allocation6 + $0x8] sm:$0xff]
    %vm177 = vcmask 130048
    %178 = vst.msk [vmem:[#allocation15] sm:$0xff] %vm177, %v175
    %179 = vst.msk [vmem:[#allocation15 + $0x8] sm:$0xff] %vm177, %v176
    %v180 = vld [vmem:[#allocation15] sm:$0xff]
    %v181 = vld [vmem:[#allocation15 + $0x8] sm:$0xff]
    %v182 = vld [vmem:[#allocation15 + $0x10] sm:$0xff]
    %v183 = vld [vmem:[#allocation15 + $0x18] sm:$0xff]
    %v184 = vld [vmem:[#allocation15 + $0x20] sm:$0xff]
    %v185 = vld [vmem:[#allocation15 + $0x28] sm:$0xff]
    %v186 = vld [vmem:[#allocation15 + $0x30] sm:$0xff]
    %v187 = vld [vmem:[#allocation15 + $0x38] sm:$0xff]
    %v188 = vld [vmem:[#allocation15 + $0x40] sm:$0xff]
    %v189 = vld [vmem:[#allocation15 + $0x48] sm:$0xff]
    %v190 = vld [vmem:[#allocation15 + $0x50] sm:$0xff]
    %v191 = vld [vmem:[#allocation15 + $0x58] sm:$0xff]
    %v192 = vld [vmem:[#allocation15 + $0x60] sm:$0xff]
    %v193 = vld [vmem:[#allocation15 + $0x68] sm:$0xff]
    %v194 = vld [vmem:[#allocation15 + $0x70] sm:$0xff]
    %v195 = vld [vmem:[#allocation15 + $0x78] sm:$0xff]
    %v196 = vld [vmem:[#allocation2] sm:$0xf]
    %v197 = vld [vmem:[#allocation2 + $0x4] sm:$0xf]
    %v198 = vld [vmem:[#allocation2 + $0x8] sm:$0xf]
    %v199 = vld [vmem:[#allocation2 + $0xc] sm:$0xf]
    %v200 = vld [vmem:[#allocation2 + $0x10] sm:$0xf]
    %v201 = vld [vmem:[#allocation2 + $0x14] sm:$0xf]
    %v202 = vld [vmem:[#allocation2 + $0x18] sm:$0xf]
    %v203 = vld [vmem:[#allocation2 + $0x1c] sm:$0xf]
    %v204 = vld [vmem:[#allocation2 + $0x20] sm:$0xf]
    %v205 = vld [vmem:[#allocation2 + $0x24] sm:$0xf]
    %v206 = vld [vmem:[#allocation2 + $0x28] sm:$0xf]
    %v207 = vld [vmem:[#allocation2 + $0x2c] sm:$0xf]
    %v208 = vld [vmem:[#allocation2 + $0x30] sm:$0xf]
    %v209 = vld [vmem:[#allocation2 + $0x34] sm:$0xf]
    %v210 = vld [vmem:[#allocation2 + $0x38] sm:$0xf]
    %v211 = vld [vmem:[#allocation2 + $0x3c] sm:$0xf]
    %v212 = vlaneseq
    %v213 = vshrl.u32 %v212, 7
    %v214 = vadd.s32 %v213, 8
    %v215 = vadd.s32 %v213, 16
    %v216 = vadd.s32 %v213, 24
    %v217 = vadd.s32 %v213, 32
    %v218 = vadd.s32 %v213, 40
    %v219 = vadd.s32 %v213, 48
    %v220 = vadd.s32 %v213, 56
    %v221 = vadd.s32 %v213, 64
    %v222 = vadd.s32 %v213, 72
    %v223 = vadd.s32 %v213, 80
    %v224 = vadd.s32 %v213, 88
    %v225 = vadd.s32 %v213, 96
    %v226 = vadd.s32 %v213, 104
    %v227 = vadd.s32 %v213, 112
    %v228 = vadd.s32 %v213, 120
    %vm229 = vcmp.lt.s32.totalorder %v213, 16
    %vm230 = vcmp.lt.s32.totalorder %v214, 16
    %vm231 = vcmp.lt.s32.totalorder %v215, 16
    %vm232 = vcmp.lt.s32.totalorder %v216, 16
    %vm233 = vcmp.lt.s32.totalorder %v217, 16
    %vm234 = vcmp.lt.s32.totalorder %v218, 16
    %vm235 = vcmp.lt.s32.totalorder %v219, 16
    %vm236 = vcmp.lt.s32.totalorder %v220, 16
    %vm237 = vcmp.lt.s32.totalorder %v221, 16
    %vm238 = vcmp.lt.s32.totalorder %v222, 16
    %vm239 = vcmp.lt.s32.totalorder %v223, 16
    %vm240 = vcmp.lt.s32.totalorder %v224, 16
    %vm241 = vcmp.lt.s32.totalorder %v225, 16
    %vm242 = vcmp.lt.s32.totalorder %v226, 16
    %vm243 = vcmp.lt.s32.totalorder %v227, 16
    %vm244 = vcmp.lt.s32.totalorder %v228, 16
    %v245 = vsel %vm229, 1, 0
    %v246 = vsel %vm230, 1, 0
    %v247 = vsel %vm231, 1, 0
    %v248 = vsel %vm232, 1, 0
    %v249 = vsel %vm233, 1, 0
    %v250 = vsel %vm234, 1, 0
    %v251 = vsel %vm235, 1, 0
    %v252 = vsel %vm236, 1, 0
    %v253 = vsel %vm237, 1, 0
    %v254 = vsel %vm238, 1, 0
    %v255 = vsel %vm239, 1, 0
    %v256 = vsel %vm240, 1, 0
    %v257 = vsel %vm241, 1, 0
    %v258 = vsel %vm242, 1, 0
    %v259 = vsel %vm243, 1, 0
    %v260 = vsel %vm244, 1, 0
    %v261 = vcvt.s32.f32 %v245
    %v262 = vcvt.s32.f32 %v246
    %v263 = vcvt.s32.f32 %v247
    %v264 = vcvt.s32.f32 %v248
    %v265 = vcvt.s32.f32 %v249
    %v266 = vcvt.s32.f32 %v250
    %v267 = vcvt.s32.f32 %v251
    %v268 = vcvt.s32.f32 %v252
    %v269 = vcvt.s32.f32 %v253
    %v270 = vcvt.s32.f32 %v254
    %v271 = vcvt.s32.f32 %v255
    %v272 = vcvt.s32.f32 %v256
    %v273 = vcvt.s32.f32 %v257
    %v274 = vcvt.s32.f32 %v258
    %v275 = vcvt.s32.f32 %v259
    %v276 = vcvt.s32.f32 %v260
    %s277 = sld [smem:[#allocation8]]
    %v278 = vpack.c.bf16 %v181, %v180
    %v279 = vpack.c.bf16 %v183, %v182
    %v280 = vpack.c.bf16 %v185, %v184
    %v281 = vpack.c.bf16 %v187, %v186
    %v282 = vpack.c.bf16 %v189, %v188
    %v283 = vpack.c.bf16 %v191, %v190
    %v284 = vpack.c.bf16 %v193, %v192
    %v285 = vpack.c.bf16 %v195, %v194
    %v302 = vunpack.c.l.b16 %v196
    %v303 = vunpack.c.l.b16 %v197
    %v304 = vunpack.c.l.b16 %v198
    %v305 = vunpack.c.l.b16 %v199
    %v306 = vunpack.c.l.b16 %v200
    %v307 = vunpack.c.l.b16 %v201
    %v308 = vunpack.c.l.b16 %v202
    %v309 = vunpack.c.l.b16 %v203
    %v310 = vunpack.c.l.b16 %v204
    %v311 = vunpack.c.l.b16 %v205
    %v312 = vunpack.c.l.b16 %v206
    %v313 = vunpack.c.l.b16 %v207
    %v314 = vunpack.c.l.b16 %v208
    %v315 = vunpack.c.l.b16 %v209
    %v316 = vunpack.c.l.b16 %v210
    %v317 = vunpack.c.l.b16 %v211
    %v318 = vpack.c.b16 %v303, %v302
    %v319 = vpack.c.b16 %v305, %v304
    %v320 = vpack.c.b16 %v307, %v306
    %v321 = vpack.c.b16 %v309, %v308
    %v322 = vpack.c.b16 %v311, %v310
    %v323 = vpack.c.b16 %v313, %v312
    %v324 = vpack.c.b16 %v315, %v314
    %v325 = vpack.c.b16 %v317, %v316
    %334 = vmatprep.subr.bf16.mxu0 0
    %335 = vmatpush1.bf16.msra.mxu0 %v278
    %336 = vmatprep.subr.bf16.mxu0 0
    %337 = vmatpush1.bf16.msra.mxu0 %v279
    %338 = vmatprep.subr.bf16.mxu0 0
    %339 = vmatpush1.bf16.msra.mxu0 %v280
    %340 = vmatprep.subr.bf16.mxu0 0
    %341 = vmatpush1.bf16.msra.mxu0 %v281
    %342 = vmatprep.subr.bf16.mxu0 0
    %343 = vmatpush1.bf16.msra.mxu0 %v282
    %344 = vmatprep.subr.bf16.mxu0 0
    %345 = vmatpush1.bf16.msra.mxu0 %v283
    %346 = vmatprep.subr.bf16.mxu0 0
    %347 = vmatpush1.bf16.msra.mxu0 %v284
    %348 = vmatprep.subr.bf16.mxu0 0
    %349 = vmatpush1.bf16.msra.mxu0 %v285
    %350 = vmatprep.subr.bf16.mxu0 0
    %351 = vmatpush1.bf16.msra.mxu0 0
    %352 = vmatprep.subr.bf16.mxu0 0
    %353 = vmatpush1.bf16.msra.mxu0 0
    %354 = vmatprep.subr.bf16.mxu0 0
    %355 = vmatpush1.bf16.msra.mxu0 0
    %356 = vmatprep.subr.bf16.mxu0 0
    %357 = vmatpush1.bf16.msra.mxu0 0
    %358 = vmatprep.subr.bf16.mxu0 0
    %359 = vmatpush1.bf16.msra.mxu0 0
    %360 = vmatprep.subr.bf16.mxu0 0
    %361 = vmatpush1.bf16.msra.mxu0 0
    %362 = vmatprep.subr.bf16.mxu0 0
    %363 = vmatpush1.bf16.msra.mxu0 0
    %364 = vmatprep.subr.bf16.mxu0 0
    %365 = vmatpush1.bf16.msra.mxu0 0
    %366 = vmatprep.mubr.bf16.mxu0 0
    %367 = vmatmul.mubr.bf16.gmra.mrb[0].mxu0 %v318
    %v368 = vpop.f32.mrb[0].mxu0
    %v369 = vadd.f32 0.0, %v368
    %v370 = vpop.f32.mrb[0].mxu0
    %v371 = vpop.f32.mrb[0].mxu0
    %v372 = vadd.f32 0.0, %v371
    %v373 = vpop.f32.mrb[0].mxu0
    %374 = vmatprep.mubr.bf16.mxu0 0
    %375 = vmatmul.mubr.bf16.gmra.mrb[0].mxu0 %v319
    %v376 = vpop.f32.mrb[0].mxu0
    %v377 = vadd.f32 0.0, %v376
    %v378 = vpop.f32.mrb[0].mxu0
    %v379 = vpop.f32.mrb[0].mxu0
    %v380 = vadd.f32 0.0, %v379
    %v381 = vpop.f32.mrb[0].mxu0
    %382 = vmatprep.mubr.bf16.mxu0 0
    %383 = vmatmul.mubr.bf16.gmra.mrb[0].mxu0 %v320
    %v384 = vpop.f32.mrb[0].mxu0
    %v385 = vadd.f32 0.0, %v384
    %v386 = vpop.f32.mrb[0].mxu0
    %v387 = vpop.f32.mrb[0].mxu0
    %v388 = vadd.f32 0.0, %v387
    %v389 = vpop.f32.mrb[0].mxu0
    %390 = vmatprep.mubr.bf16.mxu0 0
    %391 = vmatmul.mubr.bf16.gmra.mrb[0].mxu0 %v321
    %v392 = vpop.f32.mrb[0].mxu0
    %v393 = vadd.f32 0.0, %v392
    %v394 = vpop.f32.mrb[0].mxu0
    %v395 = vpop.f32.mrb[0].mxu0
    %v396 = vadd.f32 0.0, %v395
    %v397 = vpop.f32.mrb[0].mxu0
    %398 = vmatprep.mubr.bf16.mxu0 0
    %399 = vmatmul.mubr.bf16.gmra.mrb[0].mxu0 %v322
    %v400 = vpop.f32.mrb[0].mxu0
    %v401 = vadd.f32 0.0, %v400
    %v402 = vpop.f32.mrb[0].mxu0
    %v403 = vpop.f32.mrb[0].mxu0
    %v404 = vadd.f32 0.0, %v403
    %v405 = vpop.f32.mrb[0].mxu0
    %406 = vmatprep.mubr.bf16.mxu0 0
    %407 = vmatmul.mubr.bf16.gmra.mrb[0].mxu0 %v323
    %v408 = vpop.f32.mrb[0].mxu0
    %v409 = vadd.f32 0.0, %v408
    %v410 = vpop.f32.mrb[0].mxu0
    %v411 = vpop.f32.mrb[0].mxu0
    %v412 = vadd.f32 0.0, %v411
    %v413 = vpop.f32.mrb[0].mxu0
    %414 = vmatprep.mubr.bf16.mxu0 0
    %415 = vmatmul.mubr.bf16.gmra.mrb[0].mxu0 %v324
    %v416 = vpop.f32.mrb[0].mxu0
    %v417 = vadd.f32 0.0, %v416
    %v418 = vpop.f32.mrb[0].mxu0
    %v419 = vpop.f32.mrb[0].mxu0
    %v420 = vadd.f32 0.0, %v419
    %v421 = vpop.f32.mrb[0].mxu0
    %422 = vmatprep.mubr.bf16.mxu0 0
    %423 = vmatmul.mubr.bf16.gmra.mrb[0].mxu0 %v325
    %v424 = vpop.f32.mrb[0].mxu0
    %v425 = vadd.f32 0.0, %v424
    %v426 = vpop.f32.mrb[0].mxu0
    %v427 = vpop.f32.mrb[0].mxu0
    %v428 = vadd.f32 0.0, %v427
    %v429 = vpop.f32.mrb[0].mxu0
    %430 = vdwg.mxu0
    %s431 = sadd.f32 %s277, 1.0
    %v432 = vstv %s431
    %v433 = vmul.f32 %v432, %v180
    %v434 = vmul.f32 %v432, %v181
    %v435 = vmul.f32 %v432, %v182
    %v436 = vmul.f32 %v432, %v183
    %v437 = vmul.f32 %v432, %v184
    %v438 = vmul.f32 %v432, %v185
    %v439 = vmul.f32 %v432, %v186
    %v440 = vmul.f32 %v432, %v187
    %v441 = vmul.f32 %v432, %v188
    %v442 = vmul.f32 %v432, %v189
    %v443 = vmul.f32 %v432, %v190
    %v444 = vmul.f32 %v432, %v191
    %v445 = vmul.f32 %v432, %v192
    %v446 = vmul.f32 %v432, %v193
    %v447 = vmul.f32 %v432, %v194
    %v448 = vmul.f32 %v432, %v195
    %v449 = vadd.f32 %v433, %v369
    %v450 = vadd.f32 %v434, %v372
    %v451 = vadd.f32 %v435, %v377
    %v452 = vadd.f32 %v436, %v380
    %v453 = vadd.f32 %v437, %v385
    %v454 = vadd.f32 %v438, %v388
    %v455 = vadd.f32 %v439, %v393
    %v456 = vadd.f32 %v440, %v396
    %v457 = vadd.f32 %v441, %v401
    %v458 = vadd.f32 %v442, %v404
    %v459 = vadd.f32 %v443, %v409
    %v460 = vadd.f32 %v444, %v412
    %v461 = vadd.f32 %v445, %v417
    %v462 = vadd.f32 %v446, %v420
    %v463 = vadd.f32 %v447, %v425
    %v464 = vadd.f32 %v448, %v428
    %v465 = vld [vmem:[#allocation9] sm:$0xf]
    %v466 = vld [vmem:[#allocation9 + $0x4] sm:$0xf]
    %v467 = vld [vmem:[#allocation9 + $0x8] sm:$0xf]
    %v468 = vld [vmem:[#allocation9 + $0xc] sm:$0xf]
    %v469 = vld [vmem:[#allocation9 + $0x10] sm:$0xf]
    %v470 = vld [vmem:[#allocation9 + $0x14] sm:$0xf]
    %v471 = vld [vmem:[#allocation9 + $0x18] sm:$0xf]
    %v472 = vld [vmem:[#allocation9 + $0x1c] sm:$0xf]
    %v473 = vld [vmem:[#allocation9 + $0x20] sm:$0xf]
    %v474 = vld [vmem:[#allocation9 + $0x24] sm:$0xf]
    %v475 = vld [vmem:[#allocation9 + $0x28] sm:$0xf]
    %v476 = vld [vmem:[#allocation9 + $0x2c] sm:$0xf]
    %v477 = vld [vmem:[#allocation9 + $0x30] sm:$0xf]
    %v478 = vld [vmem:[#allocation9 + $0x34] sm:$0xf]
    %v479 = vld [vmem:[#allocation9 + $0x38] sm:$0xf]
    %v480 = vld [vmem:[#allocation9 + $0x3c] sm:$0xf]
    %v481 = vld [vmem:[%s4] sm:$0x1]
    %v482 = vld [vmem:[%s5] sm:$0x1]
    %v483 = vld [vmem:[%s6] sm:$0x1]
    %v484 = vpack.c.bf16 %v450, %v449
    %v485 = vpack.c.bf16 %v452, %v451
    %v486 = vpack.c.bf16 %v454, %v453
    %v487 = vpack.c.bf16 %v456, %v455
    %v488 = vpack.c.bf16 %v458, %v457
    %v489 = vpack.c.bf16 %v460, %v459
    %v490 = vpack.c.bf16 %v462, %v461
    %v491 = vpack.c.bf16 %v464, %v463
    %v493 = vlaneseq
    %v494 = vshrl.u32 %v493, 7
    %v495 = vsub.s32 0, %v494
    %v496 = vrot.slane %v481, %v495
    %v514 = vunpack.c.l.b16 %v465
    %v515 = vunpack.c.l.b16 %v466
    %v516 = vunpack.c.l.b16 %v467
    %v517 = vunpack.c.l.b16 %v468
    %v518 = vunpack.c.l.b16 %v469
    %v519 = vunpack.c.l.b16 %v470
    %v520 = vunpack.c.l.b16 %v471
    %v521 = vunpack.c.l.b16 %v472
    %v522 = vunpack.c.l.b16 %v473
    %v523 = vunpack.c.l.b16 %v474
    %v524 = vunpack.c.l.b16 %v475
    %v525 = vunpack.c.l.b16 %v476
    %v526 = vunpack.c.l.b16 %v477
    %v527 = vunpack.c.l.b16 %v478
    %v528 = vunpack.c.l.b16 %v479
    %v529 = vunpack.c.l.b16 %v480
    %v530 = vpack.c.b16 %v515, %v514
    %v531 = vpack.c.b16 %v517, %v516
    %v532 = vpack.c.b16 %v519, %v518
    %v533 = vpack.c.b16 %v521, %v520
    %v534 = vpack.c.b16 %v523, %v522
    %v535 = vpack.c.b16 %v525, %v524
    %v536 = vpack.c.b16 %v527, %v526
    %v537 = vpack.c.b16 %v529, %v528
    %546 = vmatprep.subr.bf16.mxu0 0
    %547 = vmatpush1.bf16.msra.mxu0 %v530
    %548 = vmatprep.subr.bf16.mxu0 0
    %549 = vmatpush1.bf16.msra.mxu0 %v531
    %550 = vmatprep.subr.bf16.mxu0 0
    %551 = vmatpush1.bf16.msra.mxu0 %v532
    %552 = vmatprep.subr.bf16.mxu0 0
    %553 = vmatpush1.bf16.msra.mxu0 %v533
    %554 = vmatprep.subr.bf16.mxu0 0
    %555 = vmatpush1.bf16.msra.mxu0 %v534
    %556 = vmatprep.subr.bf16.mxu0 0
    %557 = vmatpush1.bf16.msra.mxu0 %v535
    %558 = vmatprep.subr.bf16.mxu0 0
    %559 = vmatpush1.bf16.msra.mxu0 %v536
    %560 = vmatprep.subr.bf16.mxu0 0
    %561 = vmatpush1.bf16.msra.mxu0 %v537
    %562 = vmatprep.subr.bf16.mxu0 0
    %563 = vmatpush1.bf16.msra.mxu0 0
    %564 = vmatprep.subr.bf16.mxu0 0
    %565 = vmatpush1.bf16.msra.mxu0 0
    %566 = vmatprep.subr.bf16.mxu0 0
    %567 = vmatpush1.bf16.msra.mxu0 0
    %568 = vmatprep.subr.bf16.mxu0 0
    %569 = vmatpush1.bf16.msra.mxu0 0
    %570 = vmatprep.subr.bf16.mxu0 0
    %571 = vmatpush1.bf16.msra.mxu0 0
    %572 = vmatprep.subr.bf16.mxu0 0
    %573 = vmatpush1.bf16.msra.mxu0 0
    %574 = vmatprep.subr.bf16.mxu0 0
    %575 = vmatpush1.bf16.msra.mxu0 0
    %576 = vmatprep.subr.bf16.mxu0 0
    %577 = vmatpush1.bf16.msra.mxu0 0
    %578 = vmatprep.mubr.bf16.mxu0 0
    %579 = vmatmul.mubr.bf16.gmra.mrb[0].mxu0 %v484
    %v580 = vpop.f32.mrb[0].mxu0
    %v581 = vadd.f32 %v496, %v580
    %v582 = vpop.f32.mrb[0].mxu0
    %v583 = vpop.f32.mrb[0].mxu0
    %v584 = vadd.f32 %v496, %v583
    %v585 = vpop.f32.mrb[0].mxu0
    %586 = vmatprep.mubr.bf16.mxu0 0
    %587 = vmatmul.mubr.bf16.gmra.mrb[0].mxu0 %v485
    %v588 = vpop.f32.mrb[0].mxu0
    %v589 = vadd.f32 %v496, %v588
    %v590 = vpop.f32.mrb[0].mxu0
    %v591 = vpop.f32.mrb[0].mxu0
    %v592 = vadd.f32 %v496, %v591
    %v593 = vpop.f32.mrb[0].mxu0
    %594 = vmatprep.mubr.bf16.mxu0 0
    %595 = vmatmul.mubr.bf16.gmra.mrb[0].mxu0 %v486
    %v596 = vpop.f32.mrb[0].mxu0
    %v597 = vadd.f32 %v496, %v596
    %v598 = vpop.f32.mrb[0].mxu0
    %v599 = vpop.f32.mrb[0].mxu0
    %v600 = vadd.f32 %v496, %v599
    %v601 = vpop.f32.mrb[0].mxu0
    %602 = vmatprep.mubr.bf16.mxu0 0
    %603 = vmatmul.mubr.bf16.gmra.mrb[0].mxu0 %v487
    %v604 = vpop.f32.mrb[0].mxu0
    %v605 = vadd.f32 %v496, %v604
    %v606 = vpop.f32.mrb[0].mxu0
    %v607 = vpop.f32.mrb[0].mxu0
    %v608 = vadd.f32 %v496, %v607
    %v609 = vpop.f32.mrb[0].mxu0
    %610 = vmatprep.mubr.bf16.mxu0 0
    %611 = vmatmul.mubr.bf16.gmra.mrb[0].mxu0 %v488
    %v612 = vpop.f32.mrb[0].mxu0
    %v613 = vadd.f32 %v496, %v612
    %v614 = vpop.f32.mrb[0].mxu0
    %v615 = vpop.f32.mrb[0].mxu0
    %v616 = vadd.f32 %v496, %v615
    %v617 = vpop.f32.mrb[0].mxu0
    %618 = vmatprep.mubr.bf16.mxu0 0
    %619 = vmatmul.mubr.bf16.gmra.mrb[0].mxu0 %v489
    %v620 = vpop.f32.mrb[0].mxu0
    %v621 = vadd.f32 %v496, %v620
    %v622 = vpop.f32.mrb[0].mxu0
    %v623 = vpop.f32.mrb[0].mxu0
    %v624 = vadd.f32 %v496, %v623
    %v625 = vpop.f32.mrb[0].mxu0
    %626 = vmatprep.mubr.bf16.mxu0 0
    %627 = vmatmul.mubr.bf16.gmra.mrb[0].mxu0 %v490
    %v628 = vpop.f32.mrb[0].mxu0
    %v629 = vadd.f32 %v496, %v628
    %v630 = vpop.f32.mrb[0].mxu0
    %v631 = vpop.f32.mrb[0].mxu0
    %v632 = vadd.f32 %v496, %v631
    %v633 = vpop.f32.mrb[0].mxu0
    %634 = vmatprep.mubr.bf16.mxu0 0
    %635 = vmatmul.mubr.bf16.gmra.mrb[0].mxu0 %v491
    %v636 = vpop.f32.mrb[0].mxu0
    %v637 = vadd.f32 %v496, %v636
    %v638 = vpop.f32.mrb[0].mxu0
    %v639 = vpop.f32.mrb[0].mxu0
    %v640 = vadd.f32 %v496, %v639
    %v641 = vpop.f32.mrb[0].mxu0
    %642 = vdwg.mxu0
    %v643 = vmul.f32 %v581, %v261
    %v644 = vmul.f32 %v584, %v262
    %v645 = vmul.f32 %v589, %v263
    %v646 = vmul.f32 %v592, %v264
    %v647 = vmul.f32 %v597, %v265
    %v648 = vmul.f32 %v600, %v266
    %v649 = vmul.f32 %v605, %v267
    %v650 = vmul.f32 %v608, %v268
    %v651 = vmul.f32 %v613, %v269
    %v652 = vmul.f32 %v616, %v270
    %v653 = vmul.f32 %v621, %v271
    %v654 = vmul.f32 %v624, %v272
    %v655 = vmul.f32 %v629, %v273
    %v656 = vmul.f32 %v632, %v274
    %v657 = vmul.f32 %v637, %v275
    %v658 = vmul.f32 %v640, %v276
    %v659 = vadd.f32 %v643, %v644
    %v660 = vadd.f32 %v659, %v645
    %v661 = vadd.f32 %v660, %v646
    %v662 = vadd.f32 %v661, %v647
    %v663 = vadd.f32 %v662, %v648
    %v664 = vadd.f32 %v663, %v649
    %v665 = vadd.f32 %v664, %v650
    %v666 = vadd.f32 %v665, %v651
    %v667 = vadd.f32 %v666, %v652
    %v668 = vadd.f32 %v667, %v653
    %v669 = vadd.f32 %v668, %v654
    %v670 = vadd.f32 %v669, %v655
    %v671 = vadd.f32 %v670, %v656
    %v672 = vadd.f32 %v671, %v657
    %v673 = vadd.f32 %v672, %v658
    %v674 = vrot.slane %v673, 4
    %v675 = vadd.f32 %v673, %v674
    %v676 = vrot.slane %v675, 2
    %v677 = vadd.f32 %v675, %v676
    %v678 = vrot.slane %v677, 1
    %v679 = vadd.f32 %v677, %v678
    %v680 = vmul.f32 %v679, 0.0625
    %v681 = vmul.f32 %v643, %v581
    %v682 = vmul.f32 %v644, %v584
    %v683 = vmul.f32 %v645, %v589
    %v684 = vmul.f32 %v646, %v592
    %v685 = vmul.f32 %v647, %v597
    %v686 = vmul.f32 %v648, %v600
    %v687 = vmul.f32 %v649, %v605
    %v688 = vmul.f32 %v650, %v608
    %v689 = vmul.f32 %v651, %v613
    %v690 = vmul.f32 %v652, %v616
    %v691 = vmul.f32 %v653, %v621
    %v692 = vmul.f32 %v654, %v624
    %v693 = vmul.f32 %v655, %v629
    %v694 = vmul.f32 %v656, %v632
    %v695 = vmul.f32 %v657, %v637
    %v696 = vmul.f32 %v658, %v640
    %v697 = vadd.f32 %v681, %v682
    %v698 = vadd.f32 %v697, %v683
    %v699 = vadd.f32 %v698, %v684
    %v700 = vadd.f32 %v699, %v685
    %v701 = vadd.f32 %v700, %v686
    %v702 = vadd.f32 %v701, %v687
    %v703 = vadd.f32 %v702, %v688
    %v704 = vadd.f32 %v703, %v689
    %v705 = vadd.f32 %v704, %v690
    %v706 = vadd.f32 %v705, %v691
    %v707 = vadd.f32 %v706, %v692
    %v708 = vadd.f32 %v707, %v693
    %v709 = vadd.f32 %v708, %v694
    %v710 = vadd.f32 %v709, %v695
    %v711 = vadd.f32 %v710, %v696
    %v712 = vrot.slane %v711, 4
    %v713 = vadd.f32 %v711, %v712
    %v714 = vrot.slane %v713, 2
    %v715 = vadd.f32 %v713, %v714
    %v716 = vrot.slane %v715, 1
    %v717 = vadd.f32 %v715, %v716
    %v718 = vmul.f32 %v717, 0.0625
    %v719 = vmul.f32 %v680, %v680
    %v720 = vsub.f32 %v718, %v719
    %v721 = vmax.f32 %v720, 0.0
    %v722 = vadd.f32 %v721, 1e-05
    %v723 = vrsqrt.pop %v722
    %v724 = vmul.f32 %v482, %v723
    %v725 = vmul.f32 %v680, %v724
    %v726 = vsub.f32 %v483, %v725
    %v728 = vlaneseq
    %v729 = vshrl.u32 %v728, 7
    %v730 = vsub.s32 0, %v729
    %v731 = vrot.slane %v724, %v730
    %v733 = vmul.f32 %v581, %v731
    %v734 = vmul.f32 %v584, %v731
    %v735 = vmul.f32 %v589, %v731
    %v736 = vmul.f32 %v592, %v731
    %v737 = vmul.f32 %v597, %v731
    %v738 = vmul.f32 %v600, %v731
    %v739 = vmul.f32 %v605, %v731
    %v740 = vmul.f32 %v608, %v731
    %v741 = vmul.f32 %v613, %v731
    %v742 = vmul.f32 %v616, %v731
    %v743 = vmul.f32 %v621, %v731
    %v744 = vmul.f32 %v624, %v731
    %v745 = vmul.f32 %v629, %v731
    %v746 = vmul.f32 %v632, %v731
    %v747 = vmul.f32 %v637, %v731
    %v748 = vmul.f32 %v640, %v731
    %v750 = vlaneseq
    %v751 = vshrl.u32 %v750, 7
    %v752 = vsub.s32 0, %v751
    %v753 = vrot.slane %v726, %v752
    %v755 = vadd.f32 %v733, %v753
    %v756 = vadd.f32 %v734, %v753
    %v757 = vadd.f32 %v735, %v753
    %v758 = vadd.f32 %v736, %v753
    %v759 = vadd.f32 %v737, %v753
    %v760 = vadd.f32 %v738, %v753
    %v761 = vadd.f32 %v739, %v753
    %v762 = vadd.f32 %v740, %v753
    %v763 = vadd.f32 %v741, %v753
    %v764 = vadd.f32 %v742, %v753
    %v765 = vadd.f32 %v743, %v753
    %v766 = vadd.f32 %v744, %v753
    %v767 = vadd.f32 %v745, %v753
    %v768 = vadd.f32 %v746, %v753
    %v769 = vadd.f32 %v747, %v753
    %v770 = vadd.f32 %v748, %v753
    %vm771 = vcmp.gt.f32.partialorder %v755, 0.0
    %vm772 = vcmp.gt.f32.partialorder %v756, 0.0
    %vm773 = vcmp.gt.f32.partialorder %v757, 0.0
    %vm774 = vcmp.gt.f32.partialorder %v758, 0.0
    %vm775 = vcmp.gt.f32.partialorder %v759, 0.0
    %vm776 = vcmp.gt.f32.partialorder %v760, 0.0
    %vm777 = vcmp.gt.f32.partialorder %v761, 0.0
    %vm778 = vcmp.gt.f32.partialorder %v762, 0.0
    %vm779 = vcmp.gt.f32.partialorder %v763, 0.0
    %vm780 = vcmp.gt.f32.partialorder %v764, 0.0
    %vm781 = vcmp.gt.f32.partialorder %v765, 0.0
    %vm782 = vcmp.gt.f32.partialorder %v766, 0.0
    %vm783 = vcmp.gt.f32.partialorder %v767, 0.0
    %vm784 = vcmp.gt.f32.partialorder %v768, 0.0
    %vm785 = vcmp.gt.f32.partialorder %v769, 0.0
    %vm786 = vcmp.gt.f32.partialorder %v770, 0.0
    %v787 = vmul.f32 %v755, 0.1
    %v788 = vmul.f32 %v756, 0.1
    %v789 = vmul.f32 %v757, 0.1
    %v790 = vmul.f32 %v758, 0.1
    %v791 = vmul.f32 %v759, 0.1
    %v792 = vmul.f32 %v760, 0.1
    %v793 = vmul.f32 %v761, 0.1
    %v794 = vmul.f32 %v762, 0.1
    %v795 = vmul.f32 %v763, 0.1
    %v796 = vmul.f32 %v764, 0.1
    %v797 = vmul.f32 %v765, 0.1
    %v798 = vmul.f32 %v766, 0.1
    %v799 = vmul.f32 %v767, 0.1
    %v800 = vmul.f32 %v768, 0.1
    %v801 = vmul.f32 %v769, 0.1
    %v802 = vmul.f32 %v770, 0.1
    %v803 = vsel %vm771, %v755, %v787
    %v804 = vsel %vm772, %v756, %v788
    %v805 = vsel %vm773, %v757, %v789
    %v806 = vsel %vm774, %v758, %v790
    %v807 = vsel %vm775, %v759, %v791
    %v808 = vsel %vm776, %v760, %v792
    %v809 = vsel %vm777, %v761, %v793
    %v810 = vsel %vm778, %v762, %v794
    %v811 = vsel %vm779, %v763, %v795
    %v812 = vsel %vm780, %v764, %v796
    %v813 = vsel %vm781, %v765, %v797
    %v814 = vsel %vm782, %v766, %v798
    %v815 = vsel %vm783, %v767, %v799
    %v816 = vsel %vm784, %v768, %v800
    %v817 = vsel %vm785, %v769, %v801
    %v818 = vsel %vm786, %v770, %v802
    %v819 = vld [vmem:[#allocation10] sm:$0xf]
    %v820 = vld [vmem:[#allocation10 + $0x4] sm:$0xf]
    %v821 = vld [vmem:[#allocation10 + $0x8] sm:$0xf]
    %v822 = vld [vmem:[#allocation10 + $0xc] sm:$0xf]
    %v823 = vld [vmem:[#allocation10 + $0x10] sm:$0xf]
    %v824 = vld [vmem:[#allocation10 + $0x14] sm:$0xf]
    %v825 = vld [vmem:[#allocation10 + $0x18] sm:$0xf]
    %v826 = vld [vmem:[#allocation10 + $0x1c] sm:$0xf]
    %v827 = vld [vmem:[#allocation10 + $0x20] sm:$0xf]
    %v828 = vld [vmem:[#allocation10 + $0x24] sm:$0xf]
    %v829 = vld [vmem:[#allocation10 + $0x28] sm:$0xf]
    %v830 = vld [vmem:[#allocation10 + $0x2c] sm:$0xf]
    %v831 = vld [vmem:[#allocation10 + $0x30] sm:$0xf]
    %v832 = vld [vmem:[#allocation10 + $0x34] sm:$0xf]
    %v833 = vld [vmem:[#allocation10 + $0x38] sm:$0xf]
    %v834 = vld [vmem:[#allocation10 + $0x3c] sm:$0xf]
    %v835 = vld [vmem:[%s8] sm:$0x1]
    %v836 = vld [vmem:[%s9] sm:$0x1]
    %v837 = vld [vmem:[%s10] sm:$0x1]
    %v838 = vpack.c.bf16 %v804, %v803
    %v839 = vpack.c.bf16 %v806, %v805
    %v840 = vpack.c.bf16 %v808, %v807
    %v841 = vpack.c.bf16 %v810, %v809
    %v842 = vpack.c.bf16 %v812, %v811
    %v843 = vpack.c.bf16 %v814, %v813
    %v844 = vpack.c.bf16 %v816, %v815
    %v845 = vpack.c.bf16 %v818, %v817
    %v847 = vlaneseq
    %v848 = vshrl.u32 %v847, 7
    %v849 = vsub.s32 0, %v848
    %v850 = vrot.slane %v835, %v849
    %v868 = vunpack.c.l.b16 %v819
    %v869 = vunpack.c.l.b16 %v820
    %v870 = vunpack.c.l.b16 %v821
    %v871 = vunpack.c.l.b16 %v822
    %v872 = vunpack.c.l.b16 %v823
    %v873 = vunpack.c.l.b16 %v824
    %v874 = vunpack.c.l.b16 %v825
    %v875 = vunpack.c.l.b16 %v826
    %v876 = vunpack.c.l.b16 %v827
    %v877 = vunpack.c.l.b16 %v828
    %v878 = vunpack.c.l.b16 %v829
    %v879 = vunpack.c.l.b16 %v830
    %v880 = vunpack.c.l.b16 %v831
    %v881 = vunpack.c.l.b16 %v832
    %v882 = vunpack.c.l.b16 %v833
    %v883 = vunpack.c.l.b16 %v834
    %v884 = vpack.c.b16 %v869, %v868
    %v885 = vpack.c.b16 %v871, %v870
    %v886 = vpack.c.b16 %v873, %v872
    %v887 = vpack.c.b16 %v875, %v874
    %v888 = vpack.c.b16 %v877, %v876
    %v889 = vpack.c.b16 %v879, %v878
    %v890 = vpack.c.b16 %v881, %v880
    %v891 = vpack.c.b16 %v883, %v882
    %900 = vmatprep.subr.bf16.mxu0 0
    %901 = vmatpush1.bf16.msra.mxu0 %v884
    %902 = vmatprep.subr.bf16.mxu0 0
    %903 = vmatpush1.bf16.msra.mxu0 %v885
    %904 = vmatprep.subr.bf16.mxu0 0
    %905 = vmatpush1.bf16.msra.mxu0 %v886
    %906 = vmatprep.subr.bf16.mxu0 0
    %907 = vmatpush1.bf16.msra.mxu0 %v887
    %908 = vmatprep.subr.bf16.mxu0 0
    %909 = vmatpush1.bf16.msra.mxu0 %v888
    %910 = vmatprep.subr.bf16.mxu0 0
    %911 = vmatpush1.bf16.msra.mxu0 %v889
    %912 = vmatprep.subr.bf16.mxu0 0
    %913 = vmatpush1.bf16.msra.mxu0 %v890
    %914 = vmatprep.subr.bf16.mxu0 0
    %915 = vmatpush1.bf16.msra.mxu0 %v891
    %916 = vmatprep.subr.bf16.mxu0 0
    %917 = vmatpush1.bf16.msra.mxu0 0
    %918 = vmatprep.subr.bf16.mxu0 0
    %919 = vmatpush1.bf16.msra.mxu0 0
    %920 = vmatprep.subr.bf16.mxu0 0
    %921 = vmatpush1.bf16.msra.mxu0 0
    %922 = vmatprep.subr.bf16.mxu0 0
    %923 = vmatpush1.bf16.msra.mxu0 0
    %924 = vmatprep.subr.bf16.mxu0 0
    %925 = vmatpush1.bf16.msra.mxu0 0
    %926 = vmatprep.subr.bf16.mxu0 0
    %927 = vmatpush1.bf16.msra.mxu0 0
    %928 = vmatprep.subr.bf16.mxu0 0
    %929 = vmatpush1.bf16.msra.mxu0 0
    %930 = vmatprep.subr.bf16.mxu0 0
    %931 = vmatpush1.bf16.msra.mxu0 0
    %932 = vmatprep.mubr.bf16.mxu0 0
    %933 = vmatmul.mubr.bf16.gmra.mrb[0].mxu0 %v838
    %v934 = vpop.f32.mrb[0].mxu0
    %v935 = vadd.f32 %v850, %v934
    %v936 = vpop.f32.mrb[0].mxu0
    %v937 = vpop.f32.mrb[0].mxu0
    %v938 = vadd.f32 %v850, %v937
    %v939 = vpop.f32.mrb[0].mxu0
    %940 = vmatprep.mubr.bf16.mxu0 0
    %941 = vmatmul.mubr.bf16.gmra.mrb[0].mxu0 %v839
    %v942 = vpop.f32.mrb[0].mxu0
    %v943 = vadd.f32 %v850, %v942
    %v944 = vpop.f32.mrb[0].mxu0
    %v945 = vpop.f32.mrb[0].mxu0
    %v946 = vadd.f32 %v850, %v945
    %v947 = vpop.f32.mrb[0].mxu0
    %948 = vmatprep.mubr.bf16.mxu0 0
    %949 = vmatmul.mubr.bf16.gmra.mrb[0].mxu0 %v840
    %v950 = vpop.f32.mrb[0].mxu0
    %v951 = vadd.f32 %v850, %v950
    %v952 = vpop.f32.mrb[0].mxu0
    %v953 = vpop.f32.mrb[0].mxu0
    %v954 = vadd.f32 %v850, %v953
    %v955 = vpop.f32.mrb[0].mxu0
    %956 = vmatprep.mubr.bf16.mxu0 0
    %957 = vmatmul.mubr.bf16.gmra.mrb[0].mxu0 %v841
    %v958 = vpop.f32.mrb[0].mxu0
    %v959 = vadd.f32 %v850, %v958
    %v960 = vpop.f32.mrb[0].mxu0
    %v961 = vpop.f32.mrb[0].mxu0
    %v962 = vadd.f32 %v850, %v961
    %v963 = vpop.f32.mrb[0].mxu0
    %964 = vmatprep.mubr.bf16.mxu0 0
    %965 = vmatmul.mubr.bf16.gmra.mrb[0].mxu0 %v842
    %v966 = vpop.f32.mrb[0].mxu0
    %v967 = vadd.f32 %v850, %v966
    %v968 = vpop.f32.mrb[0].mxu0
    %v969 = vpop.f32.mrb[0].mxu0
    %v970 = vadd.f32 %v850, %v969
    %v971 = vpop.f32.mrb[0].mxu0
    %972 = vmatprep.mubr.bf16.mxu0 0
    %973 = vmatmul.mubr.bf16.gmra.mrb[0].mxu0 %v843
    %v974 = vpop.f32.mrb[0].mxu0
    %v975 = vadd.f32 %v850, %v974
    %v976 = vpop.f32.mrb[0].mxu0
    %v977 = vpop.f32.mrb[0].mxu0
    %v978 = vadd.f32 %v850, %v977
    %v979 = vpop.f32.mrb[0].mxu0
    %980 = vmatprep.mubr.bf16.mxu0 0
    %981 = vmatmul.mubr.bf16.gmra.mrb[0].mxu0 %v844
    %v982 = vpop.f32.mrb[0].mxu0
    %v983 = vadd.f32 %v850, %v982
    %v984 = vpop.f32.mrb[0].mxu0
    %v985 = vpop.f32.mrb[0].mxu0
    %v986 = vadd.f32 %v850, %v985
    %v987 = vpop.f32.mrb[0].mxu0
    %988 = vmatprep.mubr.bf16.mxu0 0
    %989 = vmatmul.mubr.bf16.gmra.mrb[0].mxu0 %v845
    %v990 = vpop.f32.mrb[0].mxu0
    %v991 = vadd.f32 %v850, %v990
    %v992 = vpop.f32.mrb[0].mxu0
    %v993 = vpop.f32.mrb[0].mxu0
    %v994 = vadd.f32 %v850, %v993
    %v995 = vpop.f32.mrb[0].mxu0
    %996 = vdwg.mxu0
    %v997 = vmul.f32 %v935, %v261
    %v998 = vmul.f32 %v938, %v262
    %v999 = vmul.f32 %v943, %v263
    %v1000 = vmul.f32 %v946, %v264
    %v1001 = vmul.f32 %v951, %v265
    %v1002 = vmul.f32 %v954, %v266
    %v1003 = vmul.f32 %v959, %v267
    %v1004 = vmul.f32 %v962, %v268
    %v1005 = vmul.f32 %v967, %v269
    %v1006 = vmul.f32 %v970, %v270
    %v1007 = vmul.f32 %v975, %v271
    %v1008 = vmul.f32 %v978, %v272
    %v1009 = vmul.f32 %v983, %v273
    %v1010 = vmul.f32 %v986, %v274
    %v1011 = vmul.f32 %v991, %v275
    %v1012 = vmul.f32 %v994, %v276
    %v1013 = vadd.f32 %v997, %v998
    %v1014 = vadd.f32 %v1013, %v999
    %v1015 = vadd.f32 %v1014, %v1000
    %v1016 = vadd.f32 %v1015, %v1001
    %v1017 = vadd.f32 %v1016, %v1002
    %v1018 = vadd.f32 %v1017, %v1003
    %v1019 = vadd.f32 %v1018, %v1004
    %v1020 = vadd.f32 %v1019, %v1005
    %v1021 = vadd.f32 %v1020, %v1006
    %v1022 = vadd.f32 %v1021, %v1007
    %v1023 = vadd.f32 %v1022, %v1008
    %v1024 = vadd.f32 %v1023, %v1009
    %v1025 = vadd.f32 %v1024, %v1010
    %v1026 = vadd.f32 %v1025, %v1011
    %v1027 = vadd.f32 %v1026, %v1012
    %v1028 = vrot.slane %v1027, 4
    %v1029 = vadd.f32 %v1027, %v1028
    %v1030 = vrot.slane %v1029, 2
    %v1031 = vadd.f32 %v1029, %v1030
    %v1032 = vrot.slane %v1031, 1
    %v1033 = vadd.f32 %v1031, %v1032
    %v1034 = vmul.f32 %v1033, 0.0625
    %v1035 = vmul.f32 %v997, %v935
    %v1036 = vmul.f32 %v998, %v938
    %v1037 = vmul.f32 %v999, %v943
    %v1038 = vmul.f32 %v1000, %v946
    %v1039 = vmul.f32 %v1001, %v951
    %v1040 = vmul.f32 %v1002, %v954
    %v1041 = vmul.f32 %v1003, %v959
    %v1042 = vmul.f32 %v1004, %v962
    %v1043 = vmul.f32 %v1005, %v967
    %v1044 = vmul.f32 %v1006, %v970
    %v1045 = vmul.f32 %v1007, %v975
    %v1046 = vmul.f32 %v1008, %v978
    %v1047 = vmul.f32 %v1009, %v983
    %v1048 = vmul.f32 %v1010, %v986
    %v1049 = vmul.f32 %v1011, %v991
    %v1050 = vmul.f32 %v1012, %v994
    %v1051 = vadd.f32 %v1035, %v1036
    %v1052 = vadd.f32 %v1051, %v1037
    %v1053 = vadd.f32 %v1052, %v1038
    %v1054 = vadd.f32 %v1053, %v1039
    %v1055 = vadd.f32 %v1054, %v1040
    %v1056 = vadd.f32 %v1055, %v1041
    %v1057 = vadd.f32 %v1056, %v1042
    %v1058 = vadd.f32 %v1057, %v1043
    %v1059 = vadd.f32 %v1058, %v1044
    %v1060 = vadd.f32 %v1059, %v1045
    %v1061 = vadd.f32 %v1060, %v1046
    %v1062 = vadd.f32 %v1061, %v1047
    %v1063 = vadd.f32 %v1062, %v1048
    %v1064 = vadd.f32 %v1063, %v1049
    %v1065 = vadd.f32 %v1064, %v1050
    %v1066 = vrot.slane %v1065, 4
    %v1067 = vadd.f32 %v1065, %v1066
    %v1068 = vrot.slane %v1067, 2
    %v1069 = vadd.f32 %v1067, %v1068
    %v1070 = vrot.slane %v1069, 1
    %v1071 = vadd.f32 %v1069, %v1070
    %v1072 = vmul.f32 %v1071, 0.0625
    %v1073 = vmul.f32 %v1034, %v1034
    %v1074 = vsub.f32 %v1072, %v1073
    %v1075 = vmax.f32 %v1074, 0.0
    %v1076 = vadd.f32 %v1075, 1e-05
    %v1077 = vrsqrt.pop %v1076
    %v1078 = vmul.f32 %v836, %v1077
    %v1079 = vmul.f32 %v1034, %v1078
    %v1080 = vsub.f32 %v837, %v1079
    %v1082 = vlaneseq
    %v1083 = vshrl.u32 %v1082, 7
    %v1084 = vsub.s32 0, %v1083
    %v1085 = vrot.slane %v1078, %v1084
    %v1087 = vmul.f32 %v935, %v1085
    %v1088 = vmul.f32 %v938, %v1085
    %v1089 = vmul.f32 %v943, %v1085
    %v1090 = vmul.f32 %v946, %v1085
    %v1091 = vmul.f32 %v951, %v1085
    %v1092 = vmul.f32 %v954, %v1085
    %v1093 = vmul.f32 %v959, %v1085
    %v1094 = vmul.f32 %v962, %v1085
    %v1095 = vmul.f32 %v967, %v1085
    %v1096 = vmul.f32 %v970, %v1085
    %v1097 = vmul.f32 %v975, %v1085
    %v1098 = vmul.f32 %v978, %v1085
    %v1099 = vmul.f32 %v983, %v1085
    %v1100 = vmul.f32 %v986, %v1085
    %v1101 = vmul.f32 %v991, %v1085
    %v1102 = vmul.f32 %v994, %v1085
    %v1104 = vlaneseq
    %v1105 = vshrl.u32 %v1104, 7
    %v1106 = vsub.s32 0, %v1105
    %v1107 = vrot.slane %v1080, %v1106
    %v1109 = vadd.f32 %v1087, %v1107
    %v1110 = vadd.f32 %v1088, %v1107
    %v1111 = vadd.f32 %v1089, %v1107
    %v1112 = vadd.f32 %v1090, %v1107
    %v1113 = vadd.f32 %v1091, %v1107
    %v1114 = vadd.f32 %v1092, %v1107
    %v1115 = vadd.f32 %v1093, %v1107
    %v1116 = vadd.f32 %v1094, %v1107
    %v1117 = vadd.f32 %v1095, %v1107
    %v1118 = vadd.f32 %v1096, %v1107
    %v1119 = vadd.f32 %v1097, %v1107
    %v1120 = vadd.f32 %v1098, %v1107
    %v1121 = vadd.f32 %v1099, %v1107
    %v1122 = vadd.f32 %v1100, %v1107
    %v1123 = vadd.f32 %v1101, %v1107
    %v1124 = vadd.f32 %v1102, %v1107
    %vm1125 = vcmp.gt.f32.partialorder %v1109, 0.0
    %vm1126 = vcmp.gt.f32.partialorder %v1110, 0.0
    %vm1127 = vcmp.gt.f32.partialorder %v1111, 0.0
    %vm1128 = vcmp.gt.f32.partialorder %v1112, 0.0
    %vm1129 = vcmp.gt.f32.partialorder %v1113, 0.0
    %vm1130 = vcmp.gt.f32.partialorder %v1114, 0.0
    %vm1131 = vcmp.gt.f32.partialorder %v1115, 0.0
    %vm1132 = vcmp.gt.f32.partialorder %v1116, 0.0
    %vm1133 = vcmp.gt.f32.partialorder %v1117, 0.0
    %vm1134 = vcmp.gt.f32.partialorder %v1118, 0.0
    %vm1135 = vcmp.gt.f32.partialorder %v1119, 0.0
    %vm1136 = vcmp.gt.f32.partialorder %v1120, 0.0
    %vm1137 = vcmp.gt.f32.partialorder %v1121, 0.0
    %vm1138 = vcmp.gt.f32.partialorder %v1122, 0.0
    %vm1139 = vcmp.gt.f32.partialorder %v1123, 0.0
    %vm1140 = vcmp.gt.f32.partialorder %v1124, 0.0
    %v1141 = vmul.f32 %v1109, 0.1
    %v1142 = vmul.f32 %v1110, 0.1
    %v1143 = vmul.f32 %v1111, 0.1
    %v1144 = vmul.f32 %v1112, 0.1
    %v1145 = vmul.f32 %v1113, 0.1
    %v1146 = vmul.f32 %v1114, 0.1
    %v1147 = vmul.f32 %v1115, 0.1
    %v1148 = vmul.f32 %v1116, 0.1
    %v1149 = vmul.f32 %v1117, 0.1
    %v1150 = vmul.f32 %v1118, 0.1
    %v1151 = vmul.f32 %v1119, 0.1
    %v1152 = vmul.f32 %v1120, 0.1
    %v1153 = vmul.f32 %v1121, 0.1
    %v1154 = vmul.f32 %v1122, 0.1
    %v1155 = vmul.f32 %v1123, 0.1
    %v1156 = vmul.f32 %v1124, 0.1
    %v1157 = vsel %vm1125, %v1109, %v1141
    %v1158 = vsel %vm1126, %v1110, %v1142
    %v1159 = vsel %vm1127, %v1111, %v1143
    %v1160 = vsel %vm1128, %v1112, %v1144
    %v1161 = vsel %vm1129, %v1113, %v1145
    %v1162 = vsel %vm1130, %v1114, %v1146
    %v1163 = vsel %vm1131, %v1115, %v1147
    %v1164 = vsel %vm1132, %v1116, %v1148
    %v1165 = vsel %vm1133, %v1117, %v1149
    %v1166 = vsel %vm1134, %v1118, %v1150
    %v1167 = vsel %vm1135, %v1119, %v1151
    %v1168 = vsel %vm1136, %v1120, %v1152
    %v1169 = vsel %vm1137, %v1121, %v1153
    %v1170 = vsel %vm1138, %v1122, %v1154
    %v1171 = vsel %vm1139, %v1123, %v1155
    %v1172 = vsel %vm1140, %v1124, %v1156
    %s1173 = sld [smem:[#allocation8 + $0x1]]
    %v1174 = vpack.c.bf16 %v1158, %v1157
    %v1175 = vpack.c.bf16 %v1160, %v1159
    %v1176 = vpack.c.bf16 %v1162, %v1161
    %v1177 = vpack.c.bf16 %v1164, %v1163
    %v1178 = vpack.c.bf16 %v1166, %v1165
    %v1179 = vpack.c.bf16 %v1168, %v1167
    %v1180 = vpack.c.bf16 %v1170, %v1169
    %v1181 = vpack.c.bf16 %v1172, %v1171
    %1182 = vmatprep.subr.bf16.mxu0 0
    %1183 = vmatpush1.bf16.msra.mxu0 %v1174
    %1184 = vmatprep.subr.bf16.mxu0 0
    %1185 = vmatpush1.bf16.msra.mxu0 %v1175
    %1186 = vmatprep.subr.bf16.mxu0 0
    %1187 = vmatpush1.bf16.msra.mxu0 %v1176
    %1188 = vmatprep.subr.bf16.mxu0 0
    %1189 = vmatpush1.bf16.msra.mxu0 %v1177
    %1190 = vmatprep.subr.bf16.mxu0 0
    %1191 = vmatpush1.bf16.msra.mxu0 %v1178
    %1192 = vmatprep.subr.bf16.mxu0 0
    %1193 = vmatpush1.bf16.msra.mxu0 %v1179
    %1194 = vmatprep.subr.bf16.mxu0 0
    %1195 = vmatpush1.bf16.msra.mxu0 %v1180
    %1196 = vmatprep.subr.bf16.mxu0 0
    %1197 = vmatpush1.bf16.msra.mxu0 %v1181
    %1198 = vmatprep.subr.bf16.mxu0 0
    %1199 = vmatpush1.bf16.msra.mxu0 0
    %1200 = vmatprep.subr.bf16.mxu0 0
    %1201 = vmatpush1.bf16.msra.mxu0 0
    %1202 = vmatprep.subr.bf16.mxu0 0
    %1203 = vmatpush1.bf16.msra.mxu0 0
    %1204 = vmatprep.subr.bf16.mxu0 0
    %1205 = vmatpush1.bf16.msra.mxu0 0
    %1206 = vmatprep.subr.bf16.mxu0 0
    %1207 = vmatpush1.bf16.msra.mxu0 0
    %1208 = vmatprep.subr.bf16.mxu0 0
    %1209 = vmatpush1.bf16.msra.mxu0 0
    %1210 = vmatprep.subr.bf16.mxu0 0
    %1211 = vmatpush1.bf16.msra.mxu0 0
    %1212 = vmatprep.subr.bf16.mxu0 0
    %1213 = vmatpush1.bf16.msra.mxu0 0
    %1214 = vmatprep.mubr.bf16.mxu0 0
    %1215 = vmatmul.mubr.bf16.gmra.mrb[0].mxu0 %v318
    %v1216 = vpop.f32.mrb[0].mxu0
    %v1217 = vadd.f32 0.0, %v1216
    %v1218 = vpop.f32.mrb[0].mxu0
    %v1219 = vpop.f32.mrb[0].mxu0
    %v1220 = vadd.f32 0.0, %v1219
    %v1221 = vpop.f32.mrb[0].mxu0
    %1222 = vmatprep.mubr.bf16.mxu0 0
    %1223 = vmatmul.mubr.bf16.gmra.mrb[0].mxu0 %v319
    %v1224 = vpop.f32.mrb[0].mxu0
    %v1225 = vadd.f32 0.0, %v1224
    %v1226 = vpop.f32.mrb[0].mxu0
    %v1227 = vpop.f32.mrb[0].mxu0
    %v1228 = vadd.f32 0.0, %v1227
    %v1229 = vpop.f32.mrb[0].mxu0
    %1230 = vmatprep.mubr.bf16.mxu0 0
    %1231 = vmatmul.mubr.bf16.gmra.mrb[0].mxu0 %v320
    %v1232 = vpop.f32.mrb[0].mxu0
    %v1233 = vadd.f32 0.0, %v1232
    %v1234 = vpop.f32.mrb[0].mxu0
    %v1235 = vpop.f32.mrb[0].mxu0
    %v1236 = vadd.f32 0.0, %v1235
    %v1237 = vpop.f32.mrb[0].mxu0
    %1238 = vmatprep.mubr.bf16.mxu0 0
    %1239 = vmatmul.mubr.bf16.gmra.mrb[0].mxu0 %v321
    %v1240 = vpop.f32.mrb[0].mxu0
    %v1241 = vadd.f32 0.0, %v1240
    %v1242 = vpop.f32.mrb[0].mxu0
    %v1243 = vpop.f32.mrb[0].mxu0
    %v1244 = vadd.f32 0.0, %v1243
    %v1245 = vpop.f32.mrb[0].mxu0
    %1246 = vmatprep.mubr.bf16.mxu0 0
    %1247 = vmatmul.mubr.bf16.gmra.mrb[0].mxu0 %v322
    %v1248 = vpop.f32.mrb[0].mxu0
    %v1249 = vadd.f32 0.0, %v1248
    %v1250 = vpop.f32.mrb[0].mxu0
    %v1251 = vpop.f32.mrb[0].mxu0
    %v1252 = vadd.f32 0.0, %v1251
    %v1253 = vpop.f32.mrb[0].mxu0
    %1254 = vmatprep.mubr.bf16.mxu0 0
    %1255 = vmatmul.mubr.bf16.gmra.mrb[0].mxu0 %v323
    %v1256 = vpop.f32.mrb[0].mxu0
    %v1257 = vadd.f32 0.0, %v1256
    %v1258 = vpop.f32.mrb[0].mxu0
    %v1259 = vpop.f32.mrb[0].mxu0
    %v1260 = vadd.f32 0.0, %v1259
    %v1261 = vpop.f32.mrb[0].mxu0
    %1262 = vmatprep.mubr.bf16.mxu0 0
    %1263 = vmatmul.mubr.bf16.gmra.mrb[0].mxu0 %v324
    %v1264 = vpop.f32.mrb[0].mxu0
    %v1265 = vadd.f32 0.0, %v1264
    %v1266 = vpop.f32.mrb[0].mxu0
    %v1267 = vpop.f32.mrb[0].mxu0
    %v1268 = vadd.f32 0.0, %v1267
    %v1269 = vpop.f32.mrb[0].mxu0
    %1270 = vmatprep.mubr.bf16.mxu0 0
    %1271 = vmatmul.mubr.bf16.gmra.mrb[0].mxu0 %v325
    %v1272 = vpop.f32.mrb[0].mxu0
    %v1273 = vadd.f32 0.0, %v1272
    %v1274 = vpop.f32.mrb[0].mxu0
    %v1275 = vpop.f32.mrb[0].mxu0
    %v1276 = vadd.f32 0.0, %v1275
    %v1277 = vpop.f32.mrb[0].mxu0
    %1278 = vdwg.mxu0
    %s1279 = sadd.f32 %s1173, 1.0
    %v1280 = vstv %s1279
    %v1281 = vmul.f32 %v1280, %v1157
    %v1282 = vmul.f32 %v1280, %v1158
    %v1283 = vmul.f32 %v1280, %v1159
    %v1284 = vmul.f32 %v1280, %v1160
    %v1285 = vmul.f32 %v1280, %v1161
    %v1286 = vmul.f32 %v1280, %v1162
    %v1287 = vmul.f32 %v1280, %v1163
    %v1288 = vmul.f32 %v1280, %v1164
    %v1289 = vmul.f32 %v1280, %v1165
    %v1290 = vmul.f32 %v1280, %v1166
    %v1291 = vmul.f32 %v1280, %v1167
    %v1292 = vmul.f32 %v1280, %v1168
    %v1293 = vmul.f32 %v1280, %v1169
    %v1294 = vmul.f32 %v1280, %v1170
    %v1295 = vmul.f32 %v1280, %v1171
    %v1296 = vmul.f32 %v1280, %v1172
    %v1297 = vadd.f32 %v1281, %v1217
    %v1298 = vadd.f32 %v1282, %v1220
    %v1299 = vadd.f32 %v1283, %v1225
    %v1300 = vadd.f32 %v1284, %v1228
    %v1301 = vadd.f32 %v1285, %v1233
    %v1302 = vadd.f32 %v1286, %v1236
    %v1303 = vadd.f32 %v1287, %v1241
    %v1304 = vadd.f32 %v1288, %v1244
    %v1305 = vadd.f32 %v1289, %v1249
    %v1306 = vadd.f32 %v1290, %v1252
    %v1307 = vadd.f32 %v1291, %v1257
    %v1308 = vadd.f32 %v1292, %v1260
    %v1309 = vadd.f32 %v1293, %v1265
    %v1310 = vadd.f32 %v1294, %v1268
    %v1311 = vadd.f32 %v1295, %v1273
    %v1312 = vadd.f32 %v1296, %v1276
    %v1313 = vld [vmem:[#allocation12] sm:$0xf]
    %v1314 = vld [vmem:[#allocation12 + $0x4] sm:$0xf]
    %v1315 = vld [vmem:[#allocation12 + $0x8] sm:$0xf]
    %v1316 = vld [vmem:[#allocation12 + $0xc] sm:$0xf]
    %v1317 = vld [vmem:[#allocation12 + $0x10] sm:$0xf]
    %v1318 = vld [vmem:[#allocation12 + $0x14] sm:$0xf]
    %v1319 = vld [vmem:[#allocation12 + $0x18] sm:$0xf]
    %v1320 = vld [vmem:[#allocation12 + $0x1c] sm:$0xf]
    %v1321 = vld [vmem:[#allocation12 + $0x20] sm:$0xf]
    %v1322 = vld [vmem:[#allocation12 + $0x24] sm:$0xf]
    %v1323 = vld [vmem:[#allocation12 + $0x28] sm:$0xf]
    %v1324 = vld [vmem:[#allocation12 + $0x2c] sm:$0xf]
    %v1325 = vld [vmem:[#allocation12 + $0x30] sm:$0xf]
    %v1326 = vld [vmem:[#allocation12 + $0x34] sm:$0xf]
    %v1327 = vld [vmem:[#allocation12 + $0x38] sm:$0xf]
    %v1328 = vld [vmem:[#allocation12 + $0x3c] sm:$0xf]
    %v1329 = vld [vmem:[%s12] sm:$0x1]
    %v1330 = vld [vmem:[%s13] sm:$0x1]
    %v1331 = vld [vmem:[%s14] sm:$0x1]
    %v1332 = vpack.c.bf16 %v1298, %v1297
    %v1333 = vpack.c.bf16 %v1300, %v1299
    %v1334 = vpack.c.bf16 %v1302, %v1301
    %v1335 = vpack.c.bf16 %v1304, %v1303
    %v1336 = vpack.c.bf16 %v1306, %v1305
    %v1337 = vpack.c.bf16 %v1308, %v1307
    %v1338 = vpack.c.bf16 %v1310, %v1309
    %v1339 = vpack.c.bf16 %v1312, %v1311
    %v1341 = vlaneseq
    %v1342 = vshrl.u32 %v1341, 7
    %v1343 = vsub.s32 0, %v1342
    %v1344 = vrot.slane %v1329, %v1343
    %v1362 = vunpack.c.l.b16 %v1313
    %v1363 = vunpack.c.l.b16 %v1314
    %v1364 = vunpack.c.l.b16 %v1315
    %v1365 = vunpack.c.l.b16 %v1316
    %v1366 = vunpack.c.l.b16 %v1317
    %v1367 = vunpack.c.l.b16 %v1318
    %v1368 = vunpack.c.l.b16 %v1319
    %v1369 = vunpack.c.l.b16 %v1320
    %v1370 = vunpack.c.l.b16 %v1321
    %v1371 = vunpack.c.l.b16 %v1322
    %v1372 = vunpack.c.l.b16 %v1323
    %v1373 = vunpack.c.l.b16 %v1324
    %v1374 = vunpack.c.l.b16 %v1325
    %v1375 = vunpack.c.l.b16 %v1326
    %v1376 = vunpack.c.l.b16 %v1327
    %v1377 = vunpack.c.l.b16 %v1328
    %v1378 = vpack.c.b16 %v1363, %v1362
    %v1379 = vpack.c.b16 %v1365, %v1364
    %v1380 = vpack.c.b16 %v1367, %v1366
    %v1381 = vpack.c.b16 %v1369, %v1368
    %v1382 = vpack.c.b16 %v1371, %v1370
    %v1383 = vpack.c.b16 %v1373, %v1372
    %v1384 = vpack.c.b16 %v1375, %v1374
    %v1385 = vpack.c.b16 %v1377, %v1376
    %1394 = vmatprep.subr.bf16.mxu0 0
    %1395 = vmatpush1.bf16.msra.mxu0 %v1378
    %1396 = vmatprep.subr.bf16.mxu0 0
    %1397 = vmatpush1.bf16.msra.mxu0 %v1379
    %1398 = vmatprep.subr.bf16.mxu0 0
    %1399 = vmatpush1.bf16.msra.mxu0 %v1380
    %1400 = vmatprep.subr.bf16.mxu0 0
    %1401 = vmatpush1.bf16.msra.mxu0 %v1381
    %1402 = vmatprep.subr.bf16.mxu0 0
    %1403 = vmatpush1.bf16.msra.mxu0 %v1382
    %1404 = vmatprep.subr.bf16.mxu0 0
    %1405 = vmatpush1.bf16.msra.mxu0 %v1383
    %1406 = vmatprep.subr.bf16.mxu0 0
    %1407 = vmatpush1.bf16.msra.mxu0 %v1384
    %1408 = vmatprep.subr.bf16.mxu0 0
    %1409 = vmatpush1.bf16.msra.mxu0 %v1385
    %1410 = vmatprep.subr.bf16.mxu0 0
    %1411 = vmatpush1.bf16.msra.mxu0 0
    %1412 = vmatprep.subr.bf16.mxu0 0
    %1413 = vmatpush1.bf16.msra.mxu0 0
    %1414 = vmatprep.subr.bf16.mxu0 0
    %1415 = vmatpush1.bf16.msra.mxu0 0
    %1416 = vmatprep.subr.bf16.mxu0 0
    %1417 = vmatpush1.bf16.msra.mxu0 0
    %1418 = vmatprep.subr.bf16.mxu0 0
    %1419 = vmatpush1.bf16.msra.mxu0 0
    %1420 = vmatprep.subr.bf16.mxu0 0
    %1421 = vmatpush1.bf16.msra.mxu0 0
    %1422 = vmatprep.subr.bf16.mxu0 0
    %1423 = vmatpush1.bf16.msra.mxu0 0
    %1424 = vmatprep.subr.bf16.mxu0 0
    %1425 = vmatpush1.bf16.msra.mxu0 0
    %1426 = vmatprep.mubr.bf16.mxu0 0
    %1427 = vmatmul.mubr.bf16.gmra.mrb[0].mxu0 %v1332
    %v1428 = vpop.f32.mrb[0].mxu0
    %v1429 = vadd.f32 %v1344, %v1428
    %v1430 = vpop.f32.mrb[0].mxu0
    %v1431 = vpop.f32.mrb[0].mxu0
    %v1432 = vadd.f32 %v1344, %v1431
    %v1433 = vpop.f32.mrb[0].mxu0
    %1434 = vmatprep.mubr.bf16.mxu0 0
    %1435 = vmatmul.mubr.bf16.gmra.mrb[0].mxu0 %v1333
    %v1436 = vpop.f32.mrb[0].mxu0
    %v1437 = vadd.f32 %v1344, %v1436
    %v1438 = vpop.f32.mrb[0].mxu0
    %v1439 = vpop.f32.mrb[0].mxu0
    %v1440 = vadd.f32 %v1344, %v1439
    %v1441 = vpop.f32.mrb[0].mxu0
    %1442 = vmatprep.mubr.bf16.mxu0 0
    %1443 = vmatmul.mubr.bf16.gmra.mrb[0].mxu0 %v1334
    %v1444 = vpop.f32.mrb[0].mxu0
    %v1445 = vadd.f32 %v1344, %v1444
    %v1446 = vpop.f32.mrb[0].mxu0
    %v1447 = vpop.f32.mrb[0].mxu0
    %v1448 = vadd.f32 %v1344, %v1447
    %v1449 = vpop.f32.mrb[0].mxu0
    %1450 = vmatprep.mubr.bf16.mxu0 0
    %1451 = vmatmul.mubr.bf16.gmra.mrb[0].mxu0 %v1335
    %v1452 = vpop.f32.mrb[0].mxu0
    %v1453 = vadd.f32 %v1344, %v1452
    %v1454 = vpop.f32.mrb[0].mxu0
    %v1455 = vpop.f32.mrb[0].mxu0
    %v1456 = vadd.f32 %v1344, %v1455
    %v1457 = vpop.f32.mrb[0].mxu0
    %1458 = vmatprep.mubr.bf16.mxu0 0
    %1459 = vmatmul.mubr.bf16.gmra.mrb[0].mxu0 %v1336
    %v1460 = vpop.f32.mrb[0].mxu0
    %v1461 = vadd.f32 %v1344, %v1460
    %v1462 = vpop.f32.mrb[0].mxu0
    %v1463 = vpop.f32.mrb[0].mxu0
    %v1464 = vadd.f32 %v1344, %v1463
    %v1465 = vpop.f32.mrb[0].mxu0
    %1466 = vmatprep.mubr.bf16.mxu0 0
    %1467 = vmatmul.mubr.bf16.gmra.mrb[0].mxu0 %v1337
    %v1468 = vpop.f32.mrb[0].mxu0
    %v1469 = vadd.f32 %v1344, %v1468
    %v1470 = vpop.f32.mrb[0].mxu0
    %v1471 = vpop.f32.mrb[0].mxu0
    %v1472 = vadd.f32 %v1344, %v1471
    %v1473 = vpop.f32.mrb[0].mxu0
    %1474 = vmatprep.mubr.bf16.mxu0 0
    %1475 = vmatmul.mubr.bf16.gmra.mrb[0].mxu0 %v1338
    %v1476 = vpop.f32.mrb[0].mxu0
    %v1477 = vadd.f32 %v1344, %v1476
    %v1478 = vpop.f32.mrb[0].mxu0
    %v1479 = vpop.f32.mrb[0].mxu0
    %v1480 = vadd.f32 %v1344, %v1479
    %v1481 = vpop.f32.mrb[0].mxu0
    %1482 = vmatprep.mubr.bf16.mxu0 0
    %1483 = vmatmul.mubr.bf16.gmra.mrb[0].mxu0 %v1339
    %v1484 = vpop.f32.mrb[0].mxu0
    %v1485 = vadd.f32 %v1344, %v1484
    %v1486 = vpop.f32.mrb[0].mxu0
    %v1487 = vpop.f32.mrb[0].mxu0
    %v1488 = vadd.f32 %v1344, %v1487
    %v1489 = vpop.f32.mrb[0].mxu0
    %1490 = vdwg.mxu0
    %v1491 = vmul.f32 %v1429, %v261
    %v1492 = vmul.f32 %v1432, %v262
    %v1493 = vmul.f32 %v1437, %v263
    %v1494 = vmul.f32 %v1440, %v264
    %v1495 = vmul.f32 %v1445, %v265
    %v1496 = vmul.f32 %v1448, %v266
    %v1497 = vmul.f32 %v1453, %v267
    %v1498 = vmul.f32 %v1456, %v268
    %v1499 = vmul.f32 %v1461, %v269
    %v1500 = vmul.f32 %v1464, %v270
    %v1501 = vmul.f32 %v1469, %v271
    %v1502 = vmul.f32 %v1472, %v272
    %v1503 = vmul.f32 %v1477, %v273
    %v1504 = vmul.f32 %v1480, %v274
    %v1505 = vmul.f32 %v1485, %v275
    %v1506 = vmul.f32 %v1488, %v276
    %v1507 = vadd.f32 %v1491, %v1492
    %v1508 = vadd.f32 %v1507, %v1493
    %v1509 = vadd.f32 %v1508, %v1494
    %v1510 = vadd.f32 %v1509, %v1495
    %v1511 = vadd.f32 %v1510, %v1496
    %v1512 = vadd.f32 %v1511, %v1497
    %v1513 = vadd.f32 %v1512, %v1498
    %v1514 = vadd.f32 %v1513, %v1499
    %v1515 = vadd.f32 %v1514, %v1500
    %v1516 = vadd.f32 %v1515, %v1501
    %v1517 = vadd.f32 %v1516, %v1502
    %v1518 = vadd.f32 %v1517, %v1503
    %v1519 = vadd.f32 %v1518, %v1504
    %v1520 = vadd.f32 %v1519, %v1505
    %v1521 = vadd.f32 %v1520, %v1506
    %v1522 = vrot.slane %v1521, 4
    %v1523 = vadd.f32 %v1521, %v1522
    %v1524 = vrot.slane %v1523, 2
    %v1525 = vadd.f32 %v1523, %v1524
    %v1526 = vrot.slane %v1525, 1
    %v1527 = vadd.f32 %v1525, %v1526
    %v1528 = vmul.f32 %v1527, 0.0625
    %v1529 = vmul.f32 %v1491, %v1429
    %v1530 = vmul.f32 %v1492, %v1432
    %v1531 = vmul.f32 %v1493, %v1437
    %v1532 = vmul.f32 %v1494, %v1440
    %v1533 = vmul.f32 %v1495, %v1445
    %v1534 = vmul.f32 %v1496, %v1448
    %v1535 = vmul.f32 %v1497, %v1453
    %v1536 = vmul.f32 %v1498, %v1456
    %v1537 = vmul.f32 %v1499, %v1461
    %v1538 = vmul.f32 %v1500, %v1464
    %v1539 = vmul.f32 %v1501, %v1469
    %v1540 = vmul.f32 %v1502, %v1472
    %v1541 = vmul.f32 %v1503, %v1477
    %v1542 = vmul.f32 %v1504, %v1480
    %v1543 = vmul.f32 %v1505, %v1485
    %v1544 = vmul.f32 %v1506, %v1488
    %v1545 = vadd.f32 %v1529, %v1530
    %v1546 = vadd.f32 %v1545, %v1531
    %v1547 = vadd.f32 %v1546, %v1532
    %v1548 = vadd.f32 %v1547, %v1533
    %v1549 = vadd.f32 %v1548, %v1534
    %v1550 = vadd.f32 %v1549, %v1535
    %v1551 = vadd.f32 %v1550, %v1536
    %v1552 = vadd.f32 %v1551, %v1537
    %v1553 = vadd.f32 %v1552, %v1538
    %v1554 = vadd.f32 %v1553, %v1539
    %v1555 = vadd.f32 %v1554, %v1540
    %v1556 = vadd.f32 %v1555, %v1541
    %v1557 = vadd.f32 %v1556, %v1542
    %v1558 = vadd.f32 %v1557, %v1543
    %v1559 = vadd.f32 %v1558, %v1544
    %v1560 = vrot.slane %v1559, 4
    %v1561 = vadd.f32 %v1559, %v1560
    %v1562 = vrot.slane %v1561, 2
    %v1563 = vadd.f32 %v1561, %v1562
    %v1564 = vrot.slane %v1563, 1
    %v1565 = vadd.f32 %v1563, %v1564
    %v1566 = vmul.f32 %v1565, 0.0625
    %v1567 = vmul.f32 %v1528, %v1528
    %v1568 = vsub.f32 %v1566, %v1567
    %v1569 = vmax.f32 %v1568, 0.0
    %v1570 = vadd.f32 %v1569, 1e-05
    %v1571 = vrsqrt.pop %v1570
    %v1572 = vmul.f32 %v1330, %v1571
    %v1573 = vmul.f32 %v1528, %v1572
    %v1574 = vsub.f32 %v1331, %v1573
    %v1576 = vlaneseq
    %v1577 = vshrl.u32 %v1576, 7
    %v1578 = vsub.s32 0, %v1577
    %v1579 = vrot.slane %v1572, %v1578
    %v1581 = vmul.f32 %v1429, %v1579
    %v1582 = vmul.f32 %v1432, %v1579
    %v1583 = vmul.f32 %v1437, %v1579
    %v1584 = vmul.f32 %v1440, %v1579
    %v1585 = vmul.f32 %v1445, %v1579
    %v1586 = vmul.f32 %v1448, %v1579
    %v1587 = vmul.f32 %v1453, %v1579
    %v1588 = vmul.f32 %v1456, %v1579
    %v1589 = vmul.f32 %v1461, %v1579
    %v1590 = vmul.f32 %v1464, %v1579
    %v1591 = vmul.f32 %v1469, %v1579
    %v1592 = vmul.f32 %v1472, %v1579
    %v1593 = vmul.f32 %v1477, %v1579
    %v1594 = vmul.f32 %v1480, %v1579
    %v1595 = vmul.f32 %v1485, %v1579
    %v1596 = vmul.f32 %v1488, %v1579
    %v1598 = vlaneseq
    %v1599 = vshrl.u32 %v1598, 7
    %v1600 = vsub.s32 0, %v1599
    %v1601 = vrot.slane %v1574, %v1600
    %v1603 = vadd.f32 %v1581, %v1601
    %v1604 = vadd.f32 %v1582, %v1601
    %v1605 = vadd.f32 %v1583, %v1601
    %v1606 = vadd.f32 %v1584, %v1601
    %v1607 = vadd.f32 %v1585, %v1601
    %v1608 = vadd.f32 %v1586, %v1601
    %v1609 = vadd.f32 %v1587, %v1601
    %v1610 = vadd.f32 %v1588, %v1601
    %v1611 = vadd.f32 %v1589, %v1601
    %v1612 = vadd.f32 %v1590, %v1601
    %v1613 = vadd.f32 %v1591, %v1601
    %v1614 = vadd.f32 %v1592, %v1601
    %v1615 = vadd.f32 %v1593, %v1601
    %v1616 = vadd.f32 %v1594, %v1601
    %v1617 = vadd.f32 %v1595, %v1601
    %v1618 = vadd.f32 %v1596, %v1601
    %vm1619 = vcmp.gt.f32.partialorder %v1603, 0.0
    %vm1620 = vcmp.gt.f32.partialorder %v1604, 0.0
    %vm1621 = vcmp.gt.f32.partialorder %v1605, 0.0
    %vm1622 = vcmp.gt.f32.partialorder %v1606, 0.0
    %vm1623 = vcmp.gt.f32.partialorder %v1607, 0.0
    %vm1624 = vcmp.gt.f32.partialorder %v1608, 0.0
    %vm1625 = vcmp.gt.f32.partialorder %v1609, 0.0
    %vm1626 = vcmp.gt.f32.partialorder %v1610, 0.0
    %vm1627 = vcmp.gt.f32.partialorder %v1611, 0.0
    %vm1628 = vcmp.gt.f32.partialorder %v1612, 0.0
    %vm1629 = vcmp.gt.f32.partialorder %v1613, 0.0
    %vm1630 = vcmp.gt.f32.partialorder %v1614, 0.0
    %vm1631 = vcmp.gt.f32.partialorder %v1615, 0.0
    %vm1632 = vcmp.gt.f32.partialorder %v1616, 0.0
    %vm1633 = vcmp.gt.f32.partialorder %v1617, 0.0
    %vm1634 = vcmp.gt.f32.partialorder %v1618, 0.0
    %v1635 = vmul.f32 %v1603, 0.1
    %v1636 = vmul.f32 %v1604, 0.1
    %v1637 = vmul.f32 %v1605, 0.1
    %v1638 = vmul.f32 %v1606, 0.1
    %v1639 = vmul.f32 %v1607, 0.1
    %v1640 = vmul.f32 %v1608, 0.1
    %v1641 = vmul.f32 %v1609, 0.1
    %v1642 = vmul.f32 %v1610, 0.1
    %v1643 = vmul.f32 %v1611, 0.1
    %v1644 = vmul.f32 %v1612, 0.1
    %v1645 = vmul.f32 %v1613, 0.1
    %v1646 = vmul.f32 %v1614, 0.1
    %v1647 = vmul.f32 %v1615, 0.1
    %v1648 = vmul.f32 %v1616, 0.1
    %v1649 = vmul.f32 %v1617, 0.1
    %v1650 = vmul.f32 %v1618, 0.1
    %v1651 = vsel %vm1619, %v1603, %v1635
    %v1652 = vsel %vm1620, %v1604, %v1636
    %v1653 = vsel %vm1621, %v1605, %v1637
    %v1654 = vsel %vm1622, %v1606, %v1638
    %v1655 = vsel %vm1623, %v1607, %v1639
    %v1656 = vsel %vm1624, %v1608, %v1640
    %v1657 = vsel %vm1625, %v1609, %v1641
    %v1658 = vsel %vm1626, %v1610, %v1642
    %v1659 = vsel %vm1627, %v1611, %v1643
    %v1660 = vsel %vm1628, %v1612, %v1644
    %v1661 = vsel %vm1629, %v1613, %v1645
    %v1662 = vsel %vm1630, %v1614, %v1646
    %v1663 = vsel %vm1631, %v1615, %v1647
    %v1664 = vsel %vm1632, %v1616, %v1648
    %v1665 = vsel %vm1633, %v1617, %v1649
    %v1666 = vsel %vm1634, %v1618, %v1650
    %v1667 = vld [vmem:[#allocation13] sm:$0xf]
    %v1668 = vld [vmem:[#allocation13 + $0x4] sm:$0xf]
    %v1669 = vld [vmem:[#allocation13 + $0x8] sm:$0xf]
    %v1670 = vld [vmem:[#allocation13 + $0xc] sm:$0xf]
    %v1671 = vld [vmem:[#allocation13 + $0x10] sm:$0xf]
    %v1672 = vld [vmem:[#allocation13 + $0x14] sm:$0xf]
    %v1673 = vld [vmem:[#allocation13 + $0x18] sm:$0xf]
    %v1674 = vld [vmem:[#allocation13 + $0x1c] sm:$0xf]
    %v1675 = vld [vmem:[#allocation13 + $0x20] sm:$0xf]
    %v1676 = vld [vmem:[#allocation13 + $0x24] sm:$0xf]
    %v1677 = vld [vmem:[#allocation13 + $0x28] sm:$0xf]
    %v1678 = vld [vmem:[#allocation13 + $0x2c] sm:$0xf]
    %v1679 = vld [vmem:[#allocation13 + $0x30] sm:$0xf]
    %v1680 = vld [vmem:[#allocation13 + $0x34] sm:$0xf]
    %v1681 = vld [vmem:[#allocation13 + $0x38] sm:$0xf]
    %v1682 = vld [vmem:[#allocation13 + $0x3c] sm:$0xf]
    %v1683 = vld [vmem:[%s16] sm:$0x1]
    %v1684 = vld [vmem:[%s17] sm:$0x1]
    %v1685 = vld [vmem:[%s18] sm:$0x1]
    %v1686 = vpack.c.bf16 %v1652, %v1651
    %v1687 = vpack.c.bf16 %v1654, %v1653
    %v1688 = vpack.c.bf16 %v1656, %v1655
    %v1689 = vpack.c.bf16 %v1658, %v1657
    %v1690 = vpack.c.bf16 %v1660, %v1659
    %v1691 = vpack.c.bf16 %v1662, %v1661
    %v1692 = vpack.c.bf16 %v1664, %v1663
    %v1693 = vpack.c.bf16 %v1666, %v1665
    %v1695 = vlaneseq
    %v1696 = vshrl.u32 %v1695, 7
    %v1697 = vsub.s32 0, %v1696
    %v1698 = vrot.slane %v1683, %v1697
    %v1716 = vunpack.c.l.b16 %v1667
    %v1717 = vunpack.c.l.b16 %v1668
    %v1718 = vunpack.c.l.b16 %v1669
    %v1719 = vunpack.c.l.b16 %v1670
    %v1720 = vunpack.c.l.b16 %v1671
    %v1721 = vunpack.c.l.b16 %v1672
    %v1722 = vunpack.c.l.b16 %v1673
    %v1723 = vunpack.c.l.b16 %v1674
    %v1724 = vunpack.c.l.b16 %v1675
    %v1725 = vunpack.c.l.b16 %v1676
    %v1726 = vunpack.c.l.b16 %v1677
    %v1727 = vunpack.c.l.b16 %v1678
    %v1728 = vunpack.c.l.b16 %v1679
    %v1729 = vunpack.c.l.b16 %v1680
    %v1730 = vunpack.c.l.b16 %v1681
    %v1731 = vunpack.c.l.b16 %v1682
    %v1732 = vpack.c.b16 %v1717, %v1716
    %v1733 = vpack.c.b16 %v1719, %v1718
    %v1734 = vpack.c.b16 %v1721, %v1720
    %v1735 = vpack.c.b16 %v1723, %v1722
    %v1736 = vpack.c.b16 %v1725, %v1724
    %v1737 = vpack.c.b16 %v1727, %v1726
    %v1738 = vpack.c.b16 %v1729, %v1728
    %v1739 = vpack.c.b16 %v1731, %v1730
    %1748 = vmatprep.subr.bf16.mxu0 0
    %1749 = vmatpush1.bf16.msra.mxu0 %v1732
    %1750 = vmatprep.subr.bf16.mxu0 0
    %1751 = vmatpush1.bf16.msra.mxu0 %v1733
    %1752 = vmatprep.subr.bf16.mxu0 0
    %1753 = vmatpush1.bf16.msra.mxu0 %v1734
    %1754 = vmatprep.subr.bf16.mxu0 0
    %1755 = vmatpush1.bf16.msra.mxu0 %v1735
    %1756 = vmatprep.subr.bf16.mxu0 0
    %1757 = vmatpush1.bf16.msra.mxu0 %v1736
    %1758 = vmatprep.subr.bf16.mxu0 0
    %1759 = vmatpush1.bf16.msra.mxu0 %v1737
    %1760 = vmatprep.subr.bf16.mxu0 0
    %1761 = vmatpush1.bf16.msra.mxu0 %v1738
    %1762 = vmatprep.subr.bf16.mxu0 0
    %1763 = vmatpush1.bf16.msra.mxu0 %v1739
    %1764 = vmatprep.subr.bf16.mxu0 0
    %1765 = vmatpush1.bf16.msra.mxu0 0
    %1766 = vmatprep.subr.bf16.mxu0 0
    %1767 = vmatpush1.bf16.msra.mxu0 0
    %1768 = vmatprep.subr.bf16.mxu0 0
    %1769 = vmatpush1.bf16.msra.mxu0 0
    %1770 = vmatprep.subr.bf16.mxu0 0
    %1771 = vmatpush1.bf16.msra.mxu0 0
    %1772 = vmatprep.subr.bf16.mxu0 0
    %1773 = vmatpush1.bf16.msra.mxu0 0
    %1774 = vmatprep.subr.bf16.mxu0 0
    %1775 = vmatpush1.bf16.msra.mxu0 0
    %1776 = vmatprep.subr.bf16.mxu0 0
    %1777 = vmatpush1.bf16.msra.mxu0 0
    %1778 = vmatprep.subr.bf16.mxu0 0
    %1779 = vmatpush1.bf16.msra.mxu0 0
    %1780 = vmatprep.mubr.bf16.mxu0 0
    %1781 = vmatmul.mubr.bf16.gmra.mrb[0].mxu0 %v1686
    %v1782 = vpop.f32.mrb[0].mxu0
    %v1783 = vadd.f32 %v1698, %v1782
    %v1784 = vpop.f32.mrb[0].mxu0
    %v1785 = vpop.f32.mrb[0].mxu0
    %v1786 = vadd.f32 %v1698, %v1785
    %v1787 = vpop.f32.mrb[0].mxu0
    %1788 = vmatprep.mubr.bf16.mxu0 0
    %1789 = vmatmul.mubr.bf16.gmra.mrb[0].mxu0 %v1687
    %v1790 = vpop.f32.mrb[0].mxu0
    %v1791 = vadd.f32 %v1698, %v1790
    %v1792 = vpop.f32.mrb[0].mxu0
    %v1793 = vpop.f32.mrb[0].mxu0
    %v1794 = vadd.f32 %v1698, %v1793
    %v1795 = vpop.f32.mrb[0].mxu0
    %1796 = vmatprep.mubr.bf16.mxu0 0
    %1797 = vmatmul.mubr.bf16.gmra.mrb[0].mxu0 %v1688
    %v1798 = vpop.f32.mrb[0].mxu0
    %v1799 = vadd.f32 %v1698, %v1798
    %v1800 = vpop.f32.mrb[0].mxu0
    %v1801 = vpop.f32.mrb[0].mxu0
    %v1802 = vadd.f32 %v1698, %v1801
    %v1803 = vpop.f32.mrb[0].mxu0
    %1804 = vmatprep.mubr.bf16.mxu0 0
    %1805 = vmatmul.mubr.bf16.gmra.mrb[0].mxu0 %v1689
    %v1806 = vpop.f32.mrb[0].mxu0
    %v1807 = vadd.f32 %v1698, %v1806
    %v1808 = vpop.f32.mrb[0].mxu0
    %v1809 = vpop.f32.mrb[0].mxu0
    %v1810 = vadd.f32 %v1698, %v1809
    %v1811 = vpop.f32.mrb[0].mxu0
    %1812 = vmatprep.mubr.bf16.mxu0 0
    %1813 = vmatmul.mubr.bf16.gmra.mrb[0].mxu0 %v1690
    %v1814 = vpop.f32.mrb[0].mxu0
    %v1815 = vadd.f32 %v1698, %v1814
    %v1816 = vpop.f32.mrb[0].mxu0
    %v1817 = vpop.f32.mrb[0].mxu0
    %v1818 = vadd.f32 %v1698, %v1817
    %v1819 = vpop.f32.mrb[0].mxu0
    %1820 = vmatprep.mubr.bf16.mxu0 0
    %1821 = vmatmul.mubr.bf16.gmra.mrb[0].mxu0 %v1691
    %v1822 = vpop.f32.mrb[0].mxu0
    %v1823 = vadd.f32 %v1698, %v1822
    %v1824 = vpop.f32.mrb[0].mxu0
    %v1825 = vpop.f32.mrb[0].mxu0
    %v1826 = vadd.f32 %v1698, %v1825
    %v1827 = vpop.f32.mrb[0].mxu0
    %1828 = vmatprep.mubr.bf16.mxu0 0
    %1829 = vmatmul.mubr.bf16.gmra.mrb[0].mxu0 %v1692
    %v1830 = vpop.f32.mrb[0].mxu0
    %v1831 = vadd.f32 %v1698, %v1830
    %v1832 = vpop.f32.mrb[0].mxu0
    %v1833 = vpop.f32.mrb[0].mxu0
    %v1834 = vadd.f32 %v1698, %v1833
    %v1835 = vpop.f32.mrb[0].mxu0
    %1836 = vmatprep.mubr.bf16.mxu0 0
    %1837 = vmatmul.mubr.bf16.gmra.mrb[0].mxu0 %v1693
    %v1838 = vpop.f32.mrb[0].mxu0
    %v1839 = vadd.f32 %v1698, %v1838
    %v1840 = vpop.f32.mrb[0].mxu0
    %v1841 = vpop.f32.mrb[0].mxu0
    %v1842 = vadd.f32 %v1698, %v1841
    %v1843 = vpop.f32.mrb[0].mxu0
    %1844 = vdwg.mxu0
    %v1845 = vmul.f32 %v1783, %v261
    %v1846 = vmul.f32 %v1786, %v262
    %v1847 = vmul.f32 %v1791, %v263
    %v1848 = vmul.f32 %v1794, %v264
    %v1849 = vmul.f32 %v1799, %v265
    %v1850 = vmul.f32 %v1802, %v266
    %v1851 = vmul.f32 %v1807, %v267
    %v1852 = vmul.f32 %v1810, %v268
    %v1853 = vmul.f32 %v1815, %v269
    %v1854 = vmul.f32 %v1818, %v270
    %v1855 = vmul.f32 %v1823, %v271
    %v1856 = vmul.f32 %v1826, %v272
    %v1857 = vmul.f32 %v1831, %v273
    %v1858 = vmul.f32 %v1834, %v274
    %v1859 = vmul.f32 %v1839, %v275
    %v1860 = vmul.f32 %v1842, %v276
    %v1861 = vadd.f32 %v1845, %v1846
    %v1862 = vadd.f32 %v1861, %v1847
    %v1863 = vadd.f32 %v1862, %v1848
    %v1864 = vadd.f32 %v1863, %v1849
    %v1865 = vadd.f32 %v1864, %v1850
    %v1866 = vadd.f32 %v1865, %v1851
    %v1867 = vadd.f32 %v1866, %v1852
    %v1868 = vadd.f32 %v1867, %v1853
    %v1869 = vadd.f32 %v1868, %v1854
    %v1870 = vadd.f32 %v1869, %v1855
    %v1871 = vadd.f32 %v1870, %v1856
    %v1872 = vadd.f32 %v1871, %v1857
    %v1873 = vadd.f32 %v1872, %v1858
    %v1874 = vadd.f32 %v1873, %v1859
    %v1875 = vadd.f32 %v1874, %v1860
    %v1876 = vrot.slane %v1875, 4
    %v1877 = vadd.f32 %v1875, %v1876
    %v1878 = vrot.slane %v1877, 2
    %v1879 = vadd.f32 %v1877, %v1878
    %v1880 = vrot.slane %v1879, 1
    %v1881 = vadd.f32 %v1879, %v1880
    %v1882 = vmul.f32 %v1881, 0.0625
    %v1883 = vmul.f32 %v1845, %v1783
    %v1884 = vmul.f32 %v1846, %v1786
    %v1885 = vmul.f32 %v1847, %v1791
    %v1886 = vmul.f32 %v1848, %v1794
    %v1887 = vmul.f32 %v1849, %v1799
    %v1888 = vmul.f32 %v1850, %v1802
    %v1889 = vmul.f32 %v1851, %v1807
    %v1890 = vmul.f32 %v1852, %v1810
    %v1891 = vmul.f32 %v1853, %v1815
    %v1892 = vmul.f32 %v1854, %v1818
    %v1893 = vmul.f32 %v1855, %v1823
    %v1894 = vmul.f32 %v1856, %v1826
    %v1895 = vmul.f32 %v1857, %v1831
    %v1896 = vmul.f32 %v1858, %v1834
    %v1897 = vmul.f32 %v1859, %v1839
    %v1898 = vmul.f32 %v1860, %v1842
    %v1899 = vadd.f32 %v1883, %v1884
    %v1900 = vadd.f32 %v1899, %v1885
    %v1901 = vadd.f32 %v1900, %v1886
    %v1902 = vadd.f32 %v1901, %v1887
    %v1903 = vadd.f32 %v1902, %v1888
    %v1904 = vadd.f32 %v1903, %v1889
    %v1905 = vadd.f32 %v1904, %v1890
    %v1906 = vadd.f32 %v1905, %v1891
    %v1907 = vadd.f32 %v1906, %v1892
    %v1908 = vadd.f32 %v1907, %v1893
    %v1909 = vadd.f32 %v1908, %v1894
    %v1910 = vadd.f32 %v1909, %v1895
    %v1911 = vadd.f32 %v1910, %v1896
    %v1912 = vadd.f32 %v1911, %v1897
    %v1913 = vadd.f32 %v1912, %v1898
    %v1914 = vrot.slane %v1913, 4
    %v1915 = vadd.f32 %v1913, %v1914
    %v1916 = vrot.slane %v1915, 2
    %v1917 = vadd.f32 %v1915, %v1916
    %v1918 = vrot.slane %v1917, 1
    %v1919 = vadd.f32 %v1917, %v1918
    %v1920 = vmul.f32 %v1919, 0.0625
    %v1921 = vmul.f32 %v1882, %v1882
    %v1922 = vsub.f32 %v1920, %v1921
    %v1923 = vmax.f32 %v1922, 0.0
    %v1924 = vadd.f32 %v1923, 1e-05
    %v1925 = vrsqrt.pop %v1924
    %v1926 = vmul.f32 %v1684, %v1925
    %v1927 = vmul.f32 %v1882, %v1926
    %v1928 = vsub.f32 %v1685, %v1927
    %v1930 = vlaneseq
    %v1931 = vshrl.u32 %v1930, 7
    %v1932 = vsub.s32 0, %v1931
    %v1933 = vrot.slane %v1926, %v1932
    %v1935 = vmul.f32 %v1783, %v1933
    %v1936 = vmul.f32 %v1786, %v1933
    %v1937 = vmul.f32 %v1791, %v1933
    %v1938 = vmul.f32 %v1794, %v1933
    %v1939 = vmul.f32 %v1799, %v1933
    %v1940 = vmul.f32 %v1802, %v1933
    %v1941 = vmul.f32 %v1807, %v1933
    %v1942 = vmul.f32 %v1810, %v1933
    %v1943 = vmul.f32 %v1815, %v1933
    %v1944 = vmul.f32 %v1818, %v1933
    %v1945 = vmul.f32 %v1823, %v1933
    %v1946 = vmul.f32 %v1826, %v1933
    %v1947 = vmul.f32 %v1831, %v1933
    %v1948 = vmul.f32 %v1834, %v1933
    %v1949 = vmul.f32 %v1839, %v1933
    %v1950 = vmul.f32 %v1842, %v1933
    %v1952 = vlaneseq
    %v1953 = vshrl.u32 %v1952, 7
    %v1954 = vsub.s32 0, %v1953
    %v1955 = vrot.slane %v1928, %v1954
    %v1957 = vadd.f32 %v1935, %v1955
    %v1958 = vadd.f32 %v1936, %v1955
    %v1959 = vadd.f32 %v1937, %v1955
    %v1960 = vadd.f32 %v1938, %v1955
    %v1961 = vadd.f32 %v1939, %v1955
    %v1962 = vadd.f32 %v1940, %v1955
    %v1963 = vadd.f32 %v1941, %v1955
    %v1964 = vadd.f32 %v1942, %v1955
    %v1965 = vadd.f32 %v1943, %v1955
    %v1966 = vadd.f32 %v1944, %v1955
    %v1967 = vadd.f32 %v1945, %v1955
    %v1968 = vadd.f32 %v1946, %v1955
    %v1969 = vadd.f32 %v1947, %v1955
    %v1970 = vadd.f32 %v1948, %v1955
    %v1971 = vadd.f32 %v1949, %v1955
    %v1972 = vadd.f32 %v1950, %v1955
    %vm1973 = vcmp.gt.f32.partialorder %v1957, 0.0
    %vm1974 = vcmp.gt.f32.partialorder %v1958, 0.0
    %vm1975 = vcmp.gt.f32.partialorder %v1959, 0.0
    %vm1976 = vcmp.gt.f32.partialorder %v1960, 0.0
    %vm1977 = vcmp.gt.f32.partialorder %v1961, 0.0
    %vm1978 = vcmp.gt.f32.partialorder %v1962, 0.0
    %vm1979 = vcmp.gt.f32.partialorder %v1963, 0.0
    %vm1980 = vcmp.gt.f32.partialorder %v1964, 0.0
    %vm1981 = vcmp.gt.f32.partialorder %v1965, 0.0
    %vm1982 = vcmp.gt.f32.partialorder %v1966, 0.0
    %vm1983 = vcmp.gt.f32.partialorder %v1967, 0.0
    %vm1984 = vcmp.gt.f32.partialorder %v1968, 0.0
    %vm1985 = vcmp.gt.f32.partialorder %v1969, 0.0
    %vm1986 = vcmp.gt.f32.partialorder %v1970, 0.0
    %vm1987 = vcmp.gt.f32.partialorder %v1971, 0.0
    %vm1988 = vcmp.gt.f32.partialorder %v1972, 0.0
    %v1989 = vmul.f32 %v1957, 0.1
    %v1990 = vmul.f32 %v1958, 0.1
    %v1991 = vmul.f32 %v1959, 0.1
    %v1992 = vmul.f32 %v1960, 0.1
    %v1993 = vmul.f32 %v1961, 0.1
    %v1994 = vmul.f32 %v1962, 0.1
    %v1995 = vmul.f32 %v1963, 0.1
    %v1996 = vmul.f32 %v1964, 0.1
    %v1997 = vmul.f32 %v1965, 0.1
    %v1998 = vmul.f32 %v1966, 0.1
    %v1999 = vmul.f32 %v1967, 0.1
    %v2000 = vmul.f32 %v1968, 0.1
    %v2001 = vmul.f32 %v1969, 0.1
    %v2002 = vmul.f32 %v1970, 0.1
    %v2003 = vmul.f32 %v1971, 0.1
    %v2004 = vmul.f32 %v1972, 0.1
    %v2005 = vsel %vm1973, %v1957, %v1989
    %v2006 = vsel %vm1974, %v1958, %v1990
    %v2007 = vsel %vm1975, %v1959, %v1991
    %v2008 = vsel %vm1976, %v1960, %v1992
    %v2009 = vsel %vm1977, %v1961, %v1993
    %v2010 = vsel %vm1978, %v1962, %v1994
    %v2011 = vsel %vm1979, %v1963, %v1995
    %v2012 = vsel %vm1980, %v1964, %v1996
    %v2013 = vsel %vm1981, %v1965, %v1997
    %v2014 = vsel %vm1982, %v1966, %v1998
    %v2015 = vsel %vm1983, %v1967, %v1999
    %v2016 = vsel %vm1984, %v1968, %v2000
    %v2017 = vsel %vm1985, %v1969, %v2001
    %v2018 = vsel %vm1986, %v1970, %v2002
    %v2019 = vsel %vm1987, %v1971, %v2003
    %v2020 = vsel %vm1988, %v1972, %v2004
    %v2021 = vadd.f32 %v2005, %v1157
    %v2022 = vadd.f32 %v2006, %v1158
    %v2023 = vadd.f32 %v2007, %v1159
    %v2024 = vadd.f32 %v2008, %v1160
    %v2025 = vadd.f32 %v2009, %v1161
    %v2026 = vadd.f32 %v2010, %v1162
    %v2027 = vadd.f32 %v2011, %v1163
    %v2028 = vadd.f32 %v2012, %v1164
    %v2029 = vadd.f32 %v2013, %v1165
    %v2030 = vadd.f32 %v2014, %v1166
    %v2031 = vadd.f32 %v2015, %v1167
    %v2032 = vadd.f32 %v2016, %v1168
    %v2033 = vadd.f32 %v2017, %v1169
    %v2034 = vadd.f32 %v2018, %v1170
    %v2035 = vadd.f32 %v2019, %v1171
    %v2036 = vadd.f32 %v2020, %v1172
    %2037 = vst [vmem:[#allocation15] sm:$0xff] %v2021
    %2038 = vst [vmem:[#allocation15 + $0x8] sm:$0xff] %v2022
    %2039 = vst [vmem:[#allocation15 + $0x10] sm:$0xff] %v2023
    %2040 = vst [vmem:[#allocation15 + $0x18] sm:$0xff] %v2024
    %2041 = vst [vmem:[#allocation15 + $0x20] sm:$0xff] %v2025
    %2042 = vst [vmem:[#allocation15 + $0x28] sm:$0xff] %v2026
    %2043 = vst [vmem:[#allocation15 + $0x30] sm:$0xff] %v2027
    %2044 = vst [vmem:[#allocation15 + $0x38] sm:$0xff] %v2028
    %2045 = vst [vmem:[#allocation15 + $0x40] sm:$0xff] %v2029
    %2046 = vst [vmem:[#allocation15 + $0x48] sm:$0xff] %v2030
    %2047 = vst [vmem:[#allocation15 + $0x50] sm:$0xff] %v2031
    %2048 = vst [vmem:[#allocation15 + $0x58] sm:$0xff] %v2032
    %2049 = vst [vmem:[#allocation15 + $0x60] sm:$0xff] %v2033
    %2050 = vst [vmem:[#allocation15 + $0x68] sm:$0xff] %v2034
    %2051 = vst [vmem:[#allocation15 + $0x70] sm:$0xff] %v2035
    %2052 = vst [vmem:[#allocation15 + $0x78] sm:$0xff] %v2036
    // Predicated region
    $region106: #{tpu_custom_call.1} parent=1 // pred_check
      _
    $region107: #{tpu_custom_call.1} parent=1 // pred_check_branch
      %2054 = sbr.rel (0) target = $region109
    $region108: #{tpu_custom_call.1} parent=1 // pred_region
      %s2056 = ssub.s32 2048, 2048
      %2057 = vsyncadd [#allocation4], %s2056
      %s2058 = sshll.u32 [#allocation15], 4
      %s2059 = int_to_ptr.vmem [resolvable:$true] %s2058
      %2064 = dma.vmem_to_hbm [thread:$0]  %s2059, 2048, %s19, [#allocation4], 128, 128, 8
    $region109: #{tpu_custom_call.1} parent=1 // pred_fallthru
      _
    // Predicated region
    $region110: #{tpu_custom_call.1} parent=1 // pred_check
      _
    $region111: #{tpu_custom_call.1} parent=1 // pred_check_branch
      %2066 = sbr.rel (0) target = $region113
    $region112: #{tpu_custom_call.1} parent=1 // pred_region
      %2067 = dma.done [#allocation4], 2048
    $region113: #{tpu_custom_call.1} parent=1 // pred_fallthru
      _
    %2068 = vsyncpa [#allocation3], 1
    %2069 = vsyncpa [#allocation7], 1
    %2070 = vsyncpa [#allocation11], 1
    %2071 = vsyncpa [#allocation14], 1
    %2072 = vsyncpa [#allocation4], 1
    %2073 = vsyncpa [#allocation5], 1

</llo_original>
